<compile_context>
chip_gen: v6e
topology: v6e:2x2x1
jax: 0.10.0
libtpu: 0.0.40
codegen_flags: <defaults>
</compile_context>

<pallas_src>
import functools
import numpy as np
import jax
import jax.numpy as jnp
from jax.experimental import pallas as pl
from jax.experimental.pallas import tpu as pltpu

HIDDEN = 32     # hidden width of the two MLPs (original uses dim=256; small demo size)


# ----------------------------------------------------------------------------- #
# make_background (exact port)
# ----------------------------------------------------------------------------- #
def make_background(background_str, width, key=None):
    if background_str == 'black':
        return jnp.zeros((width * width, 3), jnp.float32)
    if background_str == 'white':
        return jnp.ones((width * width, 3), jnp.float32)
    if background_str == 'gaussian':
        g = jax.random.normal(key, (width * width, 3), jnp.float32)
        g = g.at[:, 1].set(g[:, 0])
        g = g.at[:, 2].set(g[:, 0])
        return g
    raise ValueError(background_str)


def _choose_tile(pix_per_view, num_views):
    """Pick a large 128-multiple pixel tile (cap 8192); pad the per-view pixel
    count up to a multiple of it (padding overhead capped ~12.5%).  Large tiles
    amortize the ~0.35us/step grid overhead and stay near the HBM roofline."""
    pad128 = -(-pix_per_view // 128) * 128
    tile, nblk = 128, -(-pix_per_view // 128)
    for t in (8192, 4096, 2048, 1024, 512, 256, 128):
        if t > pad128:
            continue
        nb = -(-pix_per_view // t)
        waste = nb * t - pix_per_view
        if waste * 8 <= pix_per_view:          # <= ~12.5% padding overhead
            tile, nblk = t, nb
            break
    # keep >=2 pixel blocks when there is only one view so the 'parallel' grid
    # axis can still shard across v7x's two TensorCores
    if num_views == 1:
        while nblk < 2 and tile > 128:
            tile //= 2
            nblk = -(-pix_per_view // tile)
    return tile, nblk * tile


# ----------------------------------------------------------------------------- #
# Pallas kernel: per-pixel MLPs + shading + background compositing
# ----------------------------------------------------------------------------- #
def _shading_kernel(pix_ref, bg_ref, w_ref, b_ref, img_ref, raw_ref, *, h2, light):
    f32 = jnp.float32
    bf16 = jnp.bfloat16
    lx, ly, lz = light

    x = pix_ref[...]                         # (10, T) f32: pts(0:3) n1(3:6) vd(6:9) hit(9)
    bg = bg_ref[...].astype(f32)             # (3, T)  bf16 background (per-view, resident)

    # ---- packed weights (bf16) / biases (f32) ----
    w0 = w_ref[0:h2, 0:3].astype(f32)        # (2H, 3)   fused layer-0 of both MLPs
    b0 = b_ref[0:h2, :]                      # (2H, 1)
    w1 = w_ref[h2:2 * h2, :]                 # (2H, 2H)  block-diag fused layer-1 (bf16)
    b1 = b_ref[h2:2 * h2, :]
    wh = w_ref[2 * h2:2 * h2 + 8, :]         # (8, 2H)   fused heads (bf16)
    bh = b_ref[2 * h2:2 * h2 + 8, :]

    # ---- layer 0 (K=3): broadcast FMAs on the VPU, no MXU pass ----
    h = (w0[:, 0:1] * x[0:1, :] + w0[:, 1:2] * x[1:2, :]
         + w0[:, 2:3] * x[2:3, :] + b0)
    h = jnp.maximum(h, 0.0)
    # ---- layer 1 + heads: two bf16 MXU matmuls, f32 accumulation ----
    h = jnp.maximum(jnp.dot(w1, h.astype(bf16), preferred_element_type=f32) + b1, 0.0)
    head = jnp.dot(wh, h.astype(bf16), preferred_element_type=f32) + bh   # (8, T)

    # ---- Normal_estimation_network ----
    # TODO(synk): exact (delta_theta, delta_phi) spherical rotation of the original
    # Normal_estimation_network is not in the provided source; tanh-bounded (max pi/2)
    # additive offset + renormalization stand-in.
    delta = jnp.tanh(head[0:3, :])
    c = np.float32(np.pi / 2.0)
    n2x = x[3:4, :] + c * delta[0:1, :]
    n2y = x[4:5, :] + c * delta[1:2, :]
    n2z = x[5:6, :] + c * delta[2:3, :]
    inv = jax.lax.rsqrt(n2x * n2x + n2y * n2y + n2z * n2z + 1e-12)
    n2x = n2x * inv
    n2y = n2y * inv
    n2z = n2z * inv

    # ---- svbrdf_network heads (white specular, 1 base material), fused sigmoid ----
    mat = jax.nn.sigmoid(head[3:8, :])         # (5, T): dalb(3) | spec(1) | rough(1)
    dalb = mat[0:3, :]
    spec = mat[3:4, :]
    rough = mat[4:5, :]

    # ---- render ----
    # TODO(synk): full SG environment-map render (num_lgt_sgs mixture) is not in the
    # provided source; single directional light Blinn-Phong style stand-in.
    ndotl = jnp.maximum(n2x * lx + n2y * ly + n2z * lz, 0.0)             # (1, T)
    hx = lx + x[6:7, :]
    hy = ly + x[7:8, :]
    hz = lz + x[8:9, :]
    hinv = jax.lax.rsqrt(hx * hx + hy * hy + hz * hz + 1e-12)
    ndoth = jnp.maximum((n2x * hx + n2y * hy + n2z * hz) * hinv, 0.0)
    # approx reciprocal on the EUP is essentially free; this is a stand-in render
    shin = 2.0 * pl.reciprocal(rough * rough + 1e-3, approx=True)
    spec_term = jnp.exp(shin * jnp.log(ndoth + 1e-6))
    diffuse_rgb = dalb * ndotl                                           # (3, T)
    spec_rgb = spec * spec_term * ndotl                                  # (1, T), white
    sg_rgb = diffuse_rgb + spec_rgb                                      # (3, T)

    # ---- composite over background + clamp (matches forward) ----
    hit = x[9:10, :]                                                     # (1, T)
    nohit_bg = (1.0 - hit) * bg

    def comp(v):
        return jnp.clip(hit * v + nohit_bg, 0.0, 1.0)                    # (3, T)

    # single sublane-dense 16-row bf16 store; each 4-row group is [rgb(3)|mask(1)]
    img = jnp.concatenate(
        [comp(sg_rgb), hit,
         comp(dalb), hit,
         comp(diffuse_rgb), hit,
         comp(spec_rgb), hit], axis=0)                                   # (16, T) f32
    img_ref[...] = img.astype(img_ref.dtype)

    # raw (uncomposited) slab, 8 f32 rows; output block is aliased across the view
    # axis, so only the last view's values reach HBM (they feed the loss).
    raw_ref[...] = jnp.concatenate([sg_rgb, dalb, spec, rough], axis=0)  # (8, T)


def shade_pixels(pix_cm, bg_cm, wslab, bslab, *, num_views, pix_per_view, tile,
                 hidden, light):
    """Run the shading kernel over (10, V*P) channels-major pixel data."""
    n_total = pix_cm.shape[1]
    assert n_total == num_views * pix_per_view
    assert pix_per_view % tile == 0
    nblk = pix_per_view // tile
    h2 = 2 * hidden

    kernel = functools.partial(_shading_kernel, h2=h2, light=light)
    # grid = (pixel_blocks, views); view axis innermost so blocks whose index_map
    # ignores the view (background input, raw output) stay resident across views.
    pix_map = lambda j, v: (0, v * nblk + j)     # flattened per-pixel block index
    view_shared = lambda j, v: (0, j)            # same block for every view
    const_map = lambda j, v: (0, 0)

    out_shape = (jax.ShapeDtypeStruct((16, n_total), jnp.bfloat16),
                 jax.ShapeDtypeStruct((8, pix_per_view), jnp.float32))

    fn = pl.pallas_call(
        kernel,
        out_shape=out_shape,
        grid_spec=pltpu.PrefetchScalarGridSpec(
            num_scalar_prefetch=0,
            grid=(nblk, num_views),
            in_specs=[
                pl.BlockSpec((10, tile), pix_map),        # fused per-pixel inputs (f32)
                pl.BlockSpec((3, tile), view_shared),     # background (bf16, resident)
                pl.BlockSpec(wslab.shape, const_map),     # packed bf16 weights
                pl.BlockSpec(bslab.shape, const_map),     # packed f32 biases
            ],
            out_specs=[
                pl.BlockSpec((16, tile), pix_map),        # composited images+mask (bf16)
                pl.BlockSpec((8, tile), view_shared),     # raw rgb/albedo, last view only
            ]),
        compiler_params=pltpu.CompilerParams(
            dimension_semantics=("parallel", "arbitrary")),
    )
    return fn(pix_cm, bg_cm, wslab, bslab)


# ----------------------------------------------------------------------------- #
# jitted pack -> kernel -> unpack path (lets XLA fuse the layout plumbing)
# ----------------------------------------------------------------------------- #
@functools.partial(jax.jit,
                   static_argnames=('num_views', 'pix_per_view', 'tile', 'p_pad',
                                    'hidden', 'light', 'symmetry'))
def _shade_path(points, normals1, view_dirs, hit_f, bg_cm, wslab, bslab, *,
                num_views, pix_per_view, tile, p_pad, hidden, light, symmetry):
    V, P = num_views, pix_per_view
    if symmetry:
        points = points.at[..., 2].set(jnp.abs(points[..., 2]))
    # TODO(synk): ideally the ray caster emits channels-major (10, N) directly;
    # this pack + transpose is the remaining wrapper-side layout pass.
    pix = jnp.concatenate([points, normals1, view_dirs, hit_f[..., None]], axis=-1)
    if p_pad != P:
        pad = p_pad - P
        pix = jnp.pad(pix, ((0, 0), (0, pad), (0, 0)))
        bg_cm = jnp.pad(bg_cm, ((0, 0), (0, pad)))
    pix_cm = jnp.moveaxis(pix, -1, 0).reshape(10, V * p_pad)     # (10, V*Pp)

    img16, raw8 = shade_pixels(pix_cm, bg_cm, wslab, bslab,
                               num_views=V, pix_per_view=p_pad, tile=tile,
                               hidden=hidden, light=light)
    # NOTE: stays bf16 downstream (no extra f32 recast pass over HBM)
    img16 = img16.reshape(16, V, p_pad)[:, :, :P]
    raw8 = raw8[:, :P]
    return img16, raw8


# ----------------------------------------------------------------------------- #
# NeuralStyleField (JAX/Pallas version)
# ----------------------------------------------------------------------------- #
class NeuralStyleFieldPallas:
    def __init__(self, key, width=16, hidden=HIDDEN, background='black',
                 symmetry=False, radius=2.0, has_diffuse=True, has_specular=True,
                 specular_top_k_sparsity=1.0):
        self.width = width
        self.hidden = hidden
        self.symmetry = symmetry
        self.radius = radius
        self.elev = 0.6283
        self.azim = 0.5
        self.has_diffuse = has_diffuse
        self.has_specular = has_specular
        self.specular_top_k_sparsity = specular_top_k_sparsity
        self.background = make_background(background, width)          # (W*W, 3) f32
        self.light = tuple(float(v) for v in (np.ones(3) / np.sqrt(3.0)))

        ks = jax.random.split(key, 8)

        def lin(k, fan_in, fan_out):
            s = 1.0 / np.sqrt(fan_in)
            kw, kb = jax.random.split(k)
            w = jax.random.uniform(kw, (fan_in, fan_out), jnp.float32, -s, s)
            b = jax.random.uniform(kb, (fan_out,), jnp.float32, -s, s)
            return w, b

        H = hidden
        nw0, nb0 = lin(ks[0], 3, H)        # Normal_estimation_network
        nw1, nb1 = lin(ks[1], H, H)
        nw2, nb2 = lin(ks[2], H, 3)
        sw0, sb0 = lin(ks[3], 3, H)        # svbrdf_network
        sw1, sb1 = lin(ks[4], H, H)
        wd, bd = lin(ks[5], H, 3)          # diffuse albedo head
        ws, bs = lin(ks[6], H, 1)          # white specular head
        wr, br = lin(ks[7], H, 1)          # roughness head

        # ---- pack into two slabs (out-major) for a single const DMA each ----
        h2 = 2 * H
        rows = 2 * h2 + 16                  # pad to a multiple of 16 (bf16 sublanes)
        w0t = jnp.concatenate([nw0.T, sw0.T], axis=0)                 # (2H, 3)
        w1t = jnp.zeros((h2, h2), jnp.float32)
        w1t = w1t.at[:H, :H].set(nw1.T).at[H:, H:].set(sw1.T)         # block-diag
        wht = jnp.zeros((8, h2), jnp.float32)
        wht = wht.at[0:3, 0:H].set(nw2.T)       # normal head uses normal-net features
        wht = wht.at[3:6, H:].set(wd.T)         # svbrdf heads use svbrdf features
        wht = wht.at[6:7, H:].set(ws.T)
        wht = wht.at[7:8, H:].set(wr.T)

        wslab = jnp.zeros((rows, h2), jnp.float32)
        wslab = wslab.at[0:h2, 0:3].set(w0t)
        wslab = wslab.at[h2:2 * h2, :].set(w1t)
        wslab = wslab.at[2 * h2:2 * h2 + 8, :].set(wht)
        bvec = jnp.concatenate([nb0, sb0, nb1, sb1, nb2, bd, bs, br])  # (2*h2+8,)
        bvec = jnp.pad(bvec, (0, rows - bvec.shape[0]))
        self.wslab = wslab.astype(jnp.bfloat16)   # bf16 weights -> native MXU rate
        self.bslab = bvec.reshape(rows, 1)        # f32 biases (added post-accumulate)

    def forward(self, scene_data, num_geom_ids=2):
        # TODO(synk): get_rays / open3d scene.cast_rays / PointCloud have no Pallas
        # equivalent; the ray-cast outputs (points, normals, view dirs, hit mask,
        # geometry ids, target image) are supplied directly as scene_data.
        points = scene_data['points']          # (V, W*W, 3) f32
        normals1 = scene_data['normals1']      # (V, W*W, 3) f32 (unit)
        view_dirs = scene_data['view_dirs']    # (V, W*W, 3) f32 (unit)
        hit = scene_data['hit']                # (V, W*W) bool
        gids = scene_data['geometry_ids']      # (V, W*W) int32
        target_img = scene_data['target_img']  # (V, W, W, 3) f32

        V, P, _ = points.shape
        W = self.width
        assert P == W * W

        hit_f = hit.astype(jnp.float32)
        tile, p_pad = _choose_tile(P, V)
        bg_cm = self.background.T.astype(jnp.bfloat16)               # (3, W*W) bf16

        img16, raw8 = _shade_path(
            points, normals1, view_dirs, hit_f, bg_cm, self.wslab, self.bslab,
            num_views=V, pix_per_view=P, tile=tile, p_pad=p_pad,
            hidden=self.hidden, light=self.light, symmetry=self.symmetry)

        def to_nchw(group):   # (4, V, P) bf16 -> (V, 4, W, W)
            return group.reshape(4, V, W, W).transpose(1, 0, 2, 3)

        img_result = {}
        img_result['rgb'] = to_nchw(img16[0:4])                       # rgb + mask
        img_result['geometry_id'] = jnp.where(hit, gids, -1).astype(
            jnp.int32).reshape(V, 1, W, W)
        tgt_flat = target_img.reshape(V, P, 3)
        tgt_comp = jnp.where(hit[..., None], tgt_flat, self.background[None])
        img_result['target_img'] = tgt_comp.reshape(V, W, W, 3).transpose(0, 3, 1, 2)
        if self.has_diffuse:
            img_result['diffuse_albedo'] = to_nchw(img16[4:8])
            img_result['diffuse_rgb'] = to_nchw(img16[8:12])
        if self.has_specular:
            img_result['specular_rgb'] = to_nchw(img16[12:16])

        # loss computed from the LAST view (the PyTorch loop overwrites `loss`);
        # raw8 already only holds the last view's uncomposited values.
        v = V - 1
        hit_v = hit[v]
        gid_v = gids[v]
        rgb_v = raw8[0:3].T      # (P, 3)
        dalb_v = raw8[3:6].T     # (P, 3)
        tgt_v = tgt_flat[v]

        loss = {'diffuse_albedo_loss': {} if self.has_diffuse else None,
                'specular_sparsity_loss': None,
                'geometry_id_to_num_pix': {} if self.has_diffuse else None,
                'abs_mean_diff_per_geometry_id': {},
                'abs_var_diff_per_geometry_id': {}}
        for g in range(num_geom_ids):
            m = (hit_v & (gid_v == g)).astype(jnp.float32)[:, None]
            n = m.sum()
            n_mean = jnp.maximum(n, 1.0)          # guard empty groups (NaN/Inf)
            n_var = jnp.maximum(n - 1.0, 1.0)     # guard single-pixel groups

            def mmean(x, m=m, n_mean=n_mean):
                return (x * m).sum(0) / n_mean

            def mvar(x, m=m, n_mean=n_mean, n_var=n_var):   # unbiased, like torch.var
                mu = (x * m).sum(0) / n_mean
                return (((x - mu) ** 2) * m).sum(0) / n_var

            if self.has_diffuse:
                loss['diffuse_albedo_loss'][g] = mvar(dalb_v).sum()
                loss['geometry_id_to_num_pix'][g] = n.astype(jnp.int32)
            loss['abs_mean_diff_per_geometry_id'][g] = jnp.abs(
                mmean(rgb_v) - mmean(tgt_v)).sum()
            loss['abs_var_diff_per_geometry_id'][g] = jnp.abs(
                mvar(rgb_v) - mvar(tgt_v)).sum()
        # specular_top_k_sparsity == 1.0 by default -> sparsity loss stays None
        # TODO(synk): top-k specular sparsity loss not implemented (unused at default).
        return img_result, loss


# ----------------------------------------------------------------------------- #
if __name__ == "__main__":
    key = jax.random.PRNGKey(0)
    NV, W = 2, 16
    P = W * W
    k_model, k_pts, k_n, k_vd, k_hit, k_gid, k_tgt = jax.random.split(key, 7)

    model = NeuralStyleFieldPallas(k_model, width=W)

    def unit(x):
        return x / jnp.linalg.norm(x, axis=-1, keepdims=True)

    scene_data = {
        'points': jax.random.normal(k_pts, (NV, P, 3), jnp.float32),
        'normals1': unit(jax.random.normal(k_n, (NV, P, 3), jnp.float32)),
        'view_dirs': unit(jax.random.normal(k_vd, (NV, P, 3), jnp.float32)),
        'hit': jax.random.uniform(k_hit, (NV, P)) > 0.3,
        'geometry_ids': jax.random.randint(k_gid, (NV, P), 0, 2, jnp.int32),
        'target_img': jax.random.uniform(k_tgt, (NV, W, W, 3), jnp.float32),
    }

    img_result, loss = model.forward(scene_data, num_geom_ids=2)
    jax.block_until_ready(img_result['rgb'])
    jax.block_until_ready(loss['abs_mean_diff_per_geometry_id'][0])

    assert img_result['rgb'].shape == (NV, 4, W, W)
    assert img_result['geometry_id'].shape == (NV, 1, W, W)
    assert img_result['target_img'].shape == (NV, 3, W, W)
    assert img_result['diffuse_albedo'].shape == (NV, 4, W, W)
    assert img_result['diffuse_rgb'].shape == (NV, 4, W, W)
    assert img_result['specular_rgb'].shape == (NV, 4, W, W)
    assert bool(jnp.isfinite(img_result['rgb'].astype(jnp.float32)).all())
    assert bool(jnp.isfinite(loss['abs_var_diff_per_geometry_id'][1]))
    print("KERNEL_OK")
</pallas_src>

<mosaic_0001>
module attributes {stable_mosaic.version = 11 : i64} {
  func.func @_shading_kernel(%arg0: i32, %arg1: i32, %arg2: memref<10x256xf32, #tpu.memory_space<vmem>>, %arg3: memref<3x256xbf16, #tpu.memory_space<vmem>>, %arg4: memref<144x64xbf16, #tpu.memory_space<vmem>>, %arg5: memref<144x1xf32, #tpu.memory_space<vmem>>, %arg6: memref<16x256xbf16, #tpu.memory_space<vmem>>, %arg7: memref<8x256xf32, #tpu.memory_space<vmem>>) attributes {dimension_semantics = [#tpu.dimension_semantics<parallel>, #tpu.dimension_semantics<arbitrary>], iteration_bounds = array<i64: 1, 2>, scalar_prefetch = 0 : i64, scratch_operands = 0 : i64, tpu.core_type = #tpu.core_type<tc>, window_params = [{transform_indices = @transform_0, window_bounds = array<i64: 10, 256>}, {transform_indices = @transform_1, window_bounds = array<i64: 3, 256>}, {pipeline_mode = #tpu.pipeline_mode<synchronous>, transform_indices = @transform_2, window_bounds = array<i64: 144, 64>}, {pipeline_mode = #tpu.pipeline_mode<synchronous>, transform_indices = @transform_3, window_bounds = array<i64: 144, 1>}, {transform_indices = @transform_4, window_bounds = array<i64: 16, 256>}, {transform_indices = @transform_5, window_bounds = array<i64: 8, 256>}]} {
    %c0 = arith.constant 0 : index
    %c0_0 = arith.constant 0 : index
    %0 = vector.load %arg2[%c0, %c0_0] : memref<10x256xf32, #tpu.memory_space<vmem>>, vector<10x256xf32>
    %c0_1 = arith.constant 0 : index
    %c0_2 = arith.constant 0 : index
    %1 = vector.load %arg3[%c0_1, %c0_2] : memref<3x256xbf16, #tpu.memory_space<vmem>>, vector<3x256xbf16>
    %2 = arith.extf %1 : vector<3x256xbf16> to vector<3x256xf32>
    %c0_3 = arith.constant 0 : index
    %c0_4 = arith.constant 0 : index
    %3 = vector.load %arg4[%c0_3, %c0_4] : memref<144x64xbf16, #tpu.memory_space<vmem>>, vector<64x3xbf16>
    %4 = arith.extf %3 : vector<64x3xbf16> to vector<64x3xf32>
    %c0_5 = arith.constant 0 : index
    %c0_6 = arith.constant 0 : index
    %5 = vector.load %arg5[%c0_5, %c0_6] : memref<144x1xf32, #tpu.memory_space<vmem>>, vector<64x1xf32>
    %c64 = arith.constant 64 : index
    %c0_7 = arith.constant 0 : index
    %6 = vector.load %arg4[%c64, %c0_7] : memref<144x64xbf16, #tpu.memory_space<vmem>>, vector<64x64xbf16>
    %c64_8 = arith.constant 64 : index
    %c0_9 = arith.constant 0 : index
    %7 = vector.load %arg5[%c64_8, %c0_9] : memref<144x1xf32, #tpu.memory_space<vmem>>, vector<64x1xf32>
    %c128 = arith.constant 128 : index
    %c0_10 = arith.constant 0 : index
    %8 = vector.load %arg4[%c128, %c0_10] : memref<144x64xbf16, #tpu.memory_space<vmem>>, vector<8x64xbf16>
    %c128_11 = arith.constant 128 : index
    %c0_12 = arith.constant 0 : index
    %9 = vector.load %arg5[%c128_11, %c0_12] : memref<144x1xf32, #tpu.memory_space<vmem>>, vector<8x1xf32>
    %10 = vector.extract_strided_slice %4 {offsets = [0, 0], sizes = [64, 1], strides = [1, 1]} : vector<64x3xf32> to vector<64x1xf32>
    %11 = vector.extract_strided_slice %0 {offsets = [0, 0], sizes = [1, 256], strides = [1, 1]} : vector<10x256xf32> to vector<1x256xf32>
    %12 = vector.broadcast %10 : vector<64x1xf32> to vector<64x256xf32>
    %13 = vector.broadcast %11 : vector<1x256xf32> to vector<64x256xf32>
    %14 = arith.mulf %12, %13 : vector<64x256xf32>
    %15 = vector.extract_strided_slice %4 {offsets = [0, 1], sizes = [64, 1], strides = [1, 1]} : vector<64x3xf32> to vector<64x1xf32>
    %16 = vector.extract_strided_slice %0 {offsets = [1, 0], sizes = [1, 256], strides = [1, 1]} : vector<10x256xf32> to vector<1x256xf32>
    %17 = vector.broadcast %15 : vector<64x1xf32> to vector<64x256xf32>
    %18 = vector.broadcast %16 : vector<1x256xf32> to vector<64x256xf32>
    %19 = arith.mulf %17, %18 : vector<64x256xf32>
    %20 = arith.addf %14, %19 : vector<64x256xf32>
    %21 = vector.extract_strided_slice %4 {offsets = [0, 2], sizes = [64, 1], strides = [1, 1]} : vector<64x3xf32> to vector<64x1xf32>
    %22 = vector.extract_strided_slice %0 {offsets = [2, 0], sizes = [1, 256], strides = [1, 1]} : vector<10x256xf32> to vector<1x256xf32>
    %23 = vector.broadcast %21 : vector<64x1xf32> to vector<64x256xf32>
    %24 = vector.broadcast %22 : vector<1x256xf32> to vector<64x256xf32>
    %25 = arith.mulf %23, %24 : vector<64x256xf32>
    %26 = arith.addf %20, %25 : vector<64x256xf32>
    %27 = vector.broadcast %5 : vector<64x1xf32> to vector<64x256xf32>
    %28 = arith.addf %26, %27 : vector<64x256xf32>
    %cst = arith.constant 0.000000e+00 : f32
    %29 = vector.broadcast %cst : f32 to vector<64x256xf32>
    %30 = arith.maximumf %28, %29 : vector<64x256xf32>
    %31 = arith.truncf %30 : vector<64x256xf32> to vector<64x256xbf16>
    %cst_13 = arith.constant dense<0.000000e+00> : vector<64x256xf32>
    %32 = tpu.matmul %6, %31, %cst_13 {dimension_numbers = #tpu.dot_dimension_numbers<[1], [0], [0], [1], [0, 0, 1, 1], [], []>} : vector<64x64xbf16>, vector<64x256xbf16>, vector<64x256xf32> -> vector<64x256xf32>
    %33 = vector.broadcast %7 : vector<64x1xf32> to vector<64x256xf32>
    %34 = arith.addf %32, %33 : vector<64x256xf32>
    %cst_14 = arith.constant 0.000000e+00 : f32
    %35 = vector.broadcast %cst_14 : f32 to vector<64x256xf32>
    %36 = arith.maximumf %34, %35 : vector<64x256xf32>
    %37 = arith.truncf %36 : vector<64x256xf32> to vector<64x256xbf16>
    %cst_15 = arith.constant dense<0.000000e+00> : vector<8x256xf32>
    %38 = tpu.matmul %8, %37, %cst_15 {dimension_numbers = #tpu.dot_dimension_numbers<[1], [0], [0], [1], [0, 0, 1, 1], [], []>} : vector<8x64xbf16>, vector<64x256xbf16>, vector<8x256xf32> -> vector<8x256xf32>
    %39 = vector.broadcast %9 : vector<8x1xf32> to vector<8x256xf32>
    %40 = arith.addf %38, %39 : vector<8x256xf32>
    %41 = vector.extract_strided_slice %40 {offsets = [0, 0], sizes = [3, 256], strides = [1, 1]} : vector<8x256xf32> to vector<3x256xf32>
    %42 = math.tanh %41 : vector<3x256xf32>
    %43 = vector.extract_strided_slice %0 {offsets = [3, 0], sizes = [1, 256], strides = [1, 1]} : vector<10x256xf32> to vector<1x256xf32>
    %44 = vector.extract_strided_slice %42 {offsets = [0, 0], sizes = [1, 256], strides = [1, 1]} : vector<3x256xf32> to vector<1x256xf32>
    %cst_16 = arith.constant 1.57079637 : f32
    %45 = vector.broadcast %cst_16 : f32 to vector<1x256xf32>
    %46 = arith.mulf %45, %44 : vector<1x256xf32>
    %47 = arith.addf %43, %46 : vector<1x256xf32>
    %48 = vector.extract_strided_slice %0 {offsets = [4, 0], sizes = [1, 256], strides = [1, 1]} : vector<10x256xf32> to vector<1x256xf32>
    %49 = vector.extract_strided_slice %42 {offsets = [1, 0], sizes = [1, 256], strides = [1, 1]} : vector<3x256xf32> to vector<1x256xf32>
    %cst_17 = arith.constant 1.57079637 : f32
    %50 = vector.broadcast %cst_17 : f32 to vector<1x256xf32>
    %51 = arith.mulf %50, %49 : vector<1x256xf32>
    %52 = arith.addf %48, %51 : vector<1x256xf32>
    %53 = vector.extract_strided_slice %0 {offsets = [5, 0], sizes = [1, 256], strides = [1, 1]} : vector<10x256xf32> to vector<1x256xf32>
    %54 = vector.extract_strided_slice %42 {offsets = [2, 0], sizes = [1, 256], strides = [1, 1]} : vector<3x256xf32> to vector<1x256xf32>
    %cst_18 = arith.constant 1.57079637 : f32
    %55 = vector.broadcast %cst_18 : f32 to vector<1x256xf32>
    %56 = arith.mulf %55, %54 : vector<1x256xf32>
    %57 = arith.addf %53, %56 : vector<1x256xf32>
    %58 = arith.mulf %47, %47 : vector<1x256xf32>
    %59 = arith.mulf %52, %52 : vector<1x256xf32>
    %60 = arith.addf %58, %59 : vector<1x256xf32>
    %61 = arith.mulf %57, %57 : vector<1x256xf32>
    %62 = arith.addf %60, %61 : vector<1x256xf32>
    %cst_19 = arith.constant 9.99999996E-13 : f32
    %63 = vector.broadcast %cst_19 : f32 to vector<1x256xf32>
    %64 = arith.addf %62, %63 : vector<1x256xf32>
    %65 = math.rsqrt %64 : vector<1x256xf32>
    %66 = arith.mulf %47, %65 : vector<1x256xf32>
    %67 = arith.mulf %52, %65 : vector<1x256xf32>
    %68 = arith.mulf %57, %65 : vector<1x256xf32>
    %69 = vector.extract_strided_slice %40 {offsets = [3, 0], sizes = [5, 256], strides = [1, 1]} : vector<8x256xf32> to vector<5x256xf32>
    %70 = arith.negf %69 : vector<5x256xf32>
    %71 = math.exp %70 : vector<5x256xf32>
    %cst_20 = arith.constant 1.000000e+00 : f32
    %72 = vector.broadcast %cst_20 : f32 to vector<5x256xf32>
    %73 = arith.addf %72, %71 : vector<5x256xf32>
    %74 = arith.divf %72, %73 : vector<5x256xf32>
    %75 = vector.extract_strided_slice %74 {offsets = [0, 0], sizes = [3, 256], strides = [1, 1]} : vector<5x256xf32> to vector<3x256xf32>
    %76 = vector.extract_strided_slice %74 {offsets = [3, 0], sizes = [1, 256], strides = [1, 1]} : vector<5x256xf32> to vector<1x256xf32>
    %77 = vector.extract_strided_slice %74 {offsets = [4, 0], sizes = [1, 256], strides = [1, 1]} : vector<5x256xf32> to vector<1x256xf32>
    %cst_21 = arith.constant 0.577350259 : f32
    %78 = vector.broadcast %cst_21 : f32 to vector<1x256xf32>
    %79 = arith.mulf %66, %78 : vector<1x256xf32>
    %cst_22 = arith.constant 0.577350259 : f32
    %80 = vector.broadcast %cst_22 : f32 to vector<1x256xf32>
    %81 = arith.mulf %67, %80 : vector<1x256xf32>
    %82 = arith.addf %79, %81 : vector<1x256xf32>
    %cst_23 = arith.constant 0.577350259 : f32
    %83 = vector.broadcast %cst_23 : f32 to vector<1x256xf32>
    %84 = arith.mulf %68, %83 : vector<1x256xf32>
    %85 = arith.addf %82, %84 : vector<1x256xf32>
    %cst_24 = arith.constant 0.000000e+00 : f32
    %86 = vector.broadcast %cst_24 : f32 to vector<1x256xf32>
    %87 = arith.maximumf %85, %86 : vector<1x256xf32>
    %88 = vector.extract_strided_slice %0 {offsets = [6, 0], sizes = [1, 256], strides = [1, 1]} : vector<10x256xf32> to vector<1x256xf32>
    %cst_25 = arith.constant 0.577350259 : f32
    %89 = vector.broadcast %cst_25 : f32 to vector<1x256xf32>
    %90 = arith.addf %89, %88 : vector<1x256xf32>
    %91 = vector.extract_strided_slice %0 {offsets = [7, 0], sizes = [1, 256], strides = [1, 1]} : vector<10x256xf32> to vector<1x256xf32>
    %cst_26 = arith.constant 0.577350259 : f32
    %92 = vector.broadcast %cst_26 : f32 to vector<1x256xf32>
    %93 = arith.addf %92, %91 : vector<1x256xf32>
    %94 = vector.extract_strided_slice %0 {offsets = [8, 0], sizes = [1, 256], strides = [1, 1]} : vector<10x256xf32> to vector<1x256xf32>
    %cst_27 = arith.constant 0.577350259 : f32
    %95 = vector.broadcast %cst_27 : f32 to vector<1x256xf32>
    %96 = arith.addf %95, %94 : vector<1x256xf32>
    %97 = arith.mulf %90, %90 : vector<1x256xf32>
    %98 = arith.mulf %93, %93 : vector<1x256xf32>
    %99 = arith.addf %97, %98 : vector<1x256xf32>
    %100 = arith.mulf %96, %96 : vector<1x256xf32>
    %101 = arith.addf %99, %100 : vector<1x256xf32>
    %cst_28 = arith.constant 9.99999996E-13 : f32
    %102 = vector.broadcast %cst_28 : f32 to vector<1x256xf32>
    %103 = arith.addf %101, %102 : vector<1x256xf32>
    %104 = math.rsqrt %103 : vector<1x256xf32>
    %105 = arith.mulf %66, %90 : vector<1x256xf32>
    %106 = arith.mulf %67, %93 : vector<1x256xf32>
    %107 = arith.addf %105, %106 : vector<1x256xf32>
    %108 = arith.mulf %68, %96 : vector<1x256xf32>
    %109 = arith.addf %107, %108 : vector<1x256xf32>
    %110 = arith.mulf %109, %104 : vector<1x256xf32>
    %cst_29 = arith.constant 0.000000e+00 : f32
    %111 = vector.broadcast %cst_29 : f32 to vector<1x256xf32>
    %112 = arith.maximumf %110, %111 : vector<1x256xf32>
    %113 = arith.mulf %77, %77 : vector<1x256xf32>
    %cst_30 = arith.constant 1.000000e-03 : f32
    %114 = vector.broadcast %cst_30 : f32 to vector<1x256xf32>
    %115 = arith.addf %113, %114 : vector<1x256xf32>
    %116 = tpu.reciprocal %115 {approx = true} : vector<1x256xf32> -> vector<1x256xf32>
    %cst_31 = arith.constant 2.000000e+00 : f32
    %117 = vector.broadcast %cst_31 : f32 to vector<1x256xf32>
    %118 = arith.mulf %117, %116 : vector<1x256xf32>
    %cst_32 = arith.constant 9.99999997E-7 : f32
    %119 = vector.broadcast %cst_32 : f32 to vector<1x256xf32>
    %120 = arith.addf %112, %119 : vector<1x256xf32>
    %121 = math.log %120 : vector<1x256xf32>
    %122 = arith.mulf %118, %121 : vector<1x256xf32>
    %123 = math.exp %122 : vector<1x256xf32>
    %124 = vector.broadcast %87 : vector<1x256xf32> to vector<3x256xf32>
    %125 = arith.mulf %75, %124 : vector<3x256xf32>
    %126 = arith.mulf %76, %123 : vector<1x256xf32>
    %127 = arith.mulf %126, %87 : vector<1x256xf32>
    %128 = vector.broadcast %127 : vector<1x256xf32> to vector<3x256xf32>
    %129 = arith.addf %125, %128 : vector<3x256xf32>
    %130 = vector.extract_strided_slice %0 {offsets = [9, 0], sizes = [1, 256], strides = [1, 1]} : vector<10x256xf32> to vector<1x256xf32>
    %cst_33 = arith.constant 1.000000e+00 : f32
    %131 = vector.broadcast %cst_33 : f32 to vector<1x256xf32>
    %132 = arith.subf %131, %130 : vector<1x256xf32>
    %133 = vector.broadcast %132 : vector<1x256xf32> to vector<3x256xf32>
    %134 = arith.mulf %133, %2 : vector<3x256xf32>
    %135 = vector.broadcast %130 : vector<1x256xf32> to vector<3x256xf32>
    %136 = arith.mulf %135, %129 : vector<3x256xf32>
    %137 = arith.addf %136, %134 : vector<3x256xf32>
    %cst_34 = arith.constant 0.000000e+00 : f32
    %cst_35 = arith.constant 1.000000e+00 : f32
    %138 = vector.broadcast %cst_34 : f32 to vector<3x256xf32>
    %139 = arith.maximumf %138, %137 : vector<3x256xf32>
    %140 = vector.broadcast %cst_35 : f32 to vector<3x256xf32>
    %141 = arith.minimumf %140, %139 : vector<3x256xf32>
    %142 = vector.broadcast %130 : vector<1x256xf32> to vector<3x256xf32>
    %143 = arith.mulf %142, %75 : vector<3x256xf32>
    %144 = arith.addf %143, %134 : vector<3x256xf32>
    %cst_36 = arith.constant 0.000000e+00 : f32
    %cst_37 = arith.constant 1.000000e+00 : f32
    %145 = vector.broadcast %cst_36 : f32 to vector<3x256xf32>
    %146 = arith.maximumf %145, %144 : vector<3x256xf32>
    %147 = vector.broadcast %cst_37 : f32 to vector<3x256xf32>
    %148 = arith.minimumf %147, %146 : vector<3x256xf32>
    %149 = vector.broadcast %130 : vector<1x256xf32> to vector<3x256xf32>
    %150 = arith.mulf %149, %125 : vector<3x256xf32>
    %151 = arith.addf %150, %134 : vector<3x256xf32>
    %cst_38 = arith.constant 0.000000e+00 : f32
    %cst_39 = arith.constant 1.000000e+00 : f32
    %152 = vector.broadcast %cst_38 : f32 to vector<3x256xf32>
    %153 = arith.maximumf %152, %151 : vector<3x256xf32>
    %154 = vector.broadcast %cst_39 : f32 to vector<3x256xf32>
    %155 = arith.minimumf %154, %153 : vector<3x256xf32>
    %156 = arith.mulf %130, %127 : vector<1x256xf32>
    %157 = vector.broadcast %156 : vector<1x256xf32> to vector<3x256xf32>
    %158 = arith.addf %157, %134 : vector<3x256xf32>
    %cst_40 = arith.constant 0.000000e+00 : f32
    %cst_41 = arith.constant 1.000000e+00 : f32
    %159 = vector.broadcast %cst_40 : f32 to vector<3x256xf32>
    %160 = arith.maximumf %159, %158 : vector<3x256xf32>
    %161 = vector.broadcast %cst_41 : f32 to vector<3x256xf32>
    %162 = arith.minimumf %161, %160 : vector<3x256xf32>
    %163 = tpu.concatenate %141, %130, %148, %130, %155, %130, %162, %130 in 0 : vector<3x256xf32>, vector<1x256xf32>, vector<3x256xf32>, vector<1x256xf32>, vector<3x256xf32>, vector<1x256xf32>, vector<3x256xf32>, vector<1x256xf32> -> vector<16x256xf32>
    %164 = arith.truncf %163 : vector<16x256xf32> to vector<16x256xbf16>
    %c0_42 = arith.constant 0 : index
    %c0_43 = arith.constant 0 : index
    %165 = vector.load %arg6[%c0_42, %c0_43] : memref<16x256xbf16, #tpu.memory_space<vmem>>, vector<16x256xbf16>
    tpu.vector_store %arg6[%c0_42, %c0_43], %164 {strides = array<i32>} : memref<16x256xbf16, #tpu.memory_space<vmem>>, vector<16x256xbf16>,
    %166 = tpu.concatenate %129, %75, %76, %77 in 0 : vector<3x256xf32>, vector<3x256xf32>, vector<1x256xf32>, vector<1x256xf32> -> vector<8x256xf32>
    %c0_44 = arith.constant 0 : index
    %c0_45 = arith.constant 0 : index
    %167 = vector.load %arg7[%c0_44, %c0_45] : memref<8x256xf32, #tpu.memory_space<vmem>>, vector<8x256xf32>
    tpu.vector_store %arg7[%c0_44, %c0_45], %166 {strides = array<i32>} : memref<8x256xf32, #tpu.memory_space<vmem>>, vector<8x256xf32>,
    return
  }
  func.func @transform_0(%arg0: i32, %arg1: i32) -> (i32, i32) {
    %c1_i32 = arith.constant 1 : i32
    %0 = arith.muli %arg1, %c1_i32 : i32
    %1 = arith.addi %0, %arg0 : i32
    %c0_i32 = arith.constant 0 : i32
    %c0_i32_0 = arith.constant 0 : i32
    return %c0_i32, %1 : i32, i32
  }
  func.func @transform_1(%arg0: i32, %arg1: i32) -> (i32, i32) {
    %c0_i32 = arith.constant 0 : i32
    %c0_i32_0 = arith.constant 0 : i32
    return %c0_i32, %arg0 : i32, i32
  }
  func.func @transform_2(%arg0: i32, %arg1: i32) -> (i32, i32) {
    %c0_i32 = arith.constant 0 : i32
    %c0_i32_0 = arith.constant 0 : i32
    %c0_i32_1 = arith.constant 0 : i32
    return %c0_i32, %c0_i32_0 : i32, i32
  }
  func.func @transform_3(%arg0: i32, %arg1: i32) -> (i32, i32) {
    %c0_i32 = arith.constant 0 : i32
    %c0_i32_0 = arith.constant 0 : i32
    %c0_i32_1 = arith.constant 0 : i32
    return %c0_i32, %c0_i32_0 : i32, i32
  }
  func.func @transform_4(%arg0: i32, %arg1: i32) -> (i32, i32) {
    %c1_i32 = arith.constant 1 : i32
    %0 = arith.muli %arg1, %c1_i32 : i32
    %1 = arith.addi %0, %arg0 : i32
    %c0_i32 = arith.constant 0 : i32
    %c0_i32_0 = arith.constant 0 : i32
    return %c0_i32, %1 : i32, i32
  }
  func.func @transform_5(%arg0: i32, %arg1: i32) -> (i32, i32) {
    %c0_i32 = arith.constant 0 : i32
    %c0_i32_0 = arith.constant 0 : i32
    return %c0_i32, %arg0 : i32, i32
  }
}

</mosaic_0001>

<llo_original>
// kernel: _shade_path.1
$region0: #{_shade_path.1}
  #allocation0 [shape = 'u32[]', space=smem, size = 0x4, offset = 0x4, fixed_abs, tag = 'smem constant byte address 0x4 - core index']
  #allocation1 [shape = 'u32[144,128]{1,0:T(1,128)}', space=vmem, size = 0x12000, scoped, tag = 'internal scratch']
  %s0 = inlined_call_operand.vmem [shape: f32[10,512], index: 0, kind: input, shape index: {}]
  %s1 = inlined_call_operand.vmem [shape: bf16[3,256], index: 1, kind: input, shape index: {}]
  %s2 = inlined_call_operand.vmem [shape: bf16[144,64], index: 2, kind: input, shape index: {}]
  %s3 = inlined_call_operand.vmem [shape: f32[144,1], index: 3, kind: input, shape index: {}]
  %s4 = inlined_call_operand.vmem [shape: bf16[16,512], index: 4, kind: output, shape index: {0}]
  %s5 = inlined_call_operand.hbm [shape: f32[8,256], index: 5, kind: output, shape index: {1}]
  %6 = xla_tuple %s4, %s5
  %s7 = sld [smem:[#allocation0]]
  $region114: #{_shade_path.1} parent=0
    _
  %s9 = ssub.s32 1, %s7
  %s10 = scalar_select 0, %s9, %s7
  $region1: #{_shade_path.1} parent=0
    #allocation2 [shape = 'u8[32768]{0}', space=vmem, size = 0x8000, scoped, tag = 'input window, operand 0']
    #allocation3 [shape = 'u8[16384]{0}', space=vmem, size = 0x4000, scoped, tag = 'output window, operand 0']
    #allocation4 [shape = 'u8[8192]{0}', space=vmem, size = 0x2000, scoped, tag = 'output window, operand 1, single buffered']
    #allocation5 [shape = 's32[2]{0}', space=sflag, size = 0x8, scoped, tag = 'scoped memory for _shade_path.1']
    %11 = vsyncpa [#allocation5], 0
    loop: start=0, step=1, limit=4
    $region2: #{_shade_path.1} parent=1 // loop_pre_header
      _
    $region3: #{_shade_path.1} parent=1 // loop_header
      %s13 = sphi 0, %s17
      %p14 = scmp.ge.s32.totalorder %s13, 4
      %s20 = sphi 0, %s32
      %s21 = sphi 0, %s28
      %s22 = sphi 0, %s20
      %s23 = sphi 0, %s21
      %s24 = sphi 0, %s22
      %s25 = sphi 0, %s23
      %s37 = sphi 0, %s39
      %s40 = sphi 0, %s37
      %s41 = sphi 0, %s40
      %s57 = sphi 0, %s41
      %s63 = sphi 0, %s65
      %s66 = sphi 0, %s63
      %s67 = sphi 0, %s66
      %s83 = sphi 0, %s67
      %s87 = sphi 0, %s87
      %s89 = sphi 0, %s87
      %s90 = sphi 0, %s89
      %s104 = sphi 0, %s90
      %s108 = sphi 0, %s108
      %s110 = sphi 0, %s108
      %s111 = sphi 0, %s110
      %s125 = sphi 0, %s111
      %s133 = sphi 0, %s135
      %s136 = sphi 0, %s133
      %s137 = sphi 0, %s136
      %s153 = sphi 0, %s137
      %s159 = sphi 0, %s161
      %s162 = sphi 0, %s159
      %s163 = sphi 0, %s162
      %s179 = sphi 0, %s163
    $region4: #{_shade_path.1} parent=1 // loop_header_branch
      %16 = sbr.rel (%p14) target = $region8
    $region5: #{_shade_path.1} parent=1 // loop_body
      %s18 = ssub.s32 %s13, 1
      %s19 = ssub.s32 %s13, 2
      %s26 = sadd.s32 1, %s21
      %p27 = scmp.ge.s32.totalorder %s26, 2
      %s28 = scalar_select %p27, 0, %s26
      %s29 = sadd.s32 1, %s20
      %s30 = scalar_select %p27, %s29, %s20
      %p31 = scmp.ge.s32.totalorder %s30, 1
      %s32 = scalar_select %p31, 0, %s30
      %s33 = sadd.s32 %s21, %s20
      %s34 = sadd.s32 %s28, %s32
      %s35 = ssub.s32 %s33, %s34
      %p36 = scmp.eq.s32.totalorder %s35, 0
      %s38 = sadd.s32 %s37, 1
      %s39 = scalar_select %p36, %s37, %s38
      %p42 = pneg %p36
      %p43 = scmp.eq.s32.totalorder %s13, 1
      %p44 = por %p42, %p43
      %p45 = scmp.ne.s32.totalorder %s37, %s40
      %p46 = scmp.eq.s32.totalorder %s13, 0
      %p47 = por %p45, %p46
      %p48 = scmp.ne.s32.totalorder %s37, %s40
      %p49 = scmp.eq.s32.totalorder %s18, 1
      %p50 = por %p48, %p49
      %p51 = scmp.ne.s32.totalorder %s40, %s41
      %p52 = scmp.eq.s32.totalorder %s18, 0
      %p53 = por %p51, %p52
      %p54 = scmp.ne.s32.totalorder %s40, %s41
      %p55 = scmp.eq.s32.totalorder %s19, 1
      %p56 = por %p54, %p55
      %p58 = scmp.ne.s32.totalorder %s41, %s57
      %p59 = scmp.eq.s32.totalorder %s19, 0
      %p60 = por %p58, %p59
      %s61 = ssub.s32 %s20, %s32
      %p62 = scmp.eq.s32.totalorder %s61, 0
      %s64 = sadd.s32 %s63, 1
      %s65 = scalar_select %p62, %s63, %s64
      %p68 = pneg %p62
      %p69 = scmp.eq.s32.totalorder %s13, 1
      %p70 = por %p68, %p69
      %p71 = scmp.ne.s32.totalorder %s63, %s66
      %p72 = scmp.eq.s32.totalorder %s13, 0
      %p73 = por %p71, %p72
      %p74 = scmp.ne.s32.totalorder %s63, %s66
      %p75 = scmp.eq.s32.totalorder %s18, 1
      %p76 = por %p74, %p75
      %p77 = scmp.ne.s32.totalorder %s66, %s67
      %p78 = scmp.eq.s32.totalorder %s18, 0
      %p79 = por %p77, %p78
      %p80 = scmp.ne.s32.totalorder %s66, %s67
      %p81 = scmp.eq.s32.totalorder %s19, 1
      %p82 = por %p80, %p81
      %p84 = scmp.ne.s32.totalorder %s67, %s83
      %p85 = scmp.eq.s32.totalorder %s19, 0
      %p86 = por %p84, %p85
      %s88 = sadd.s32 %s87, 1
      %p91 = scmp.eq.s32.totalorder %s13, 1
      %p92 = scmp.ne.s32.totalorder %s87, %s89
      %p93 = scmp.eq.s32.totalorder %s13, 0
      %p94 = por %p92, %p93
      %p95 = scmp.ne.s32.totalorder %s87, %s89
      %p96 = scmp.eq.s32.totalorder %s18, 1
      %p97 = por %p95, %p96
      %p98 = scmp.ne.s32.totalorder %s89, %s90
      %p99 = scmp.eq.s32.totalorder %s18, 0
      %p100 = por %p98, %p99
      %p101 = scmp.ne.s32.totalorder %s89, %s90
      %p102 = scmp.eq.s32.totalorder %s19, 1
      %p103 = por %p101, %p102
      %p105 = scmp.ne.s32.totalorder %s90, %s104
      %p106 = scmp.eq.s32.totalorder %s19, 0
      %p107 = por %p105, %p106
      %s109 = sadd.s32 %s108, 1
      %p112 = scmp.eq.s32.totalorder %s13, 1
      %p113 = scmp.ne.s32.totalorder %s108, %s110
      %p114 = scmp.eq.s32.totalorder %s13, 0
      %p115 = por %p113, %p114
      %p116 = scmp.ne.s32.totalorder %s108, %s110
      %p117 = scmp.eq.s32.totalorder %s18, 1
      %p118 = por %p116, %p117
      %p119 = scmp.ne.s32.totalorder %s110, %s111
      %p120 = scmp.eq.s32.totalorder %s18, 0
      %p121 = por %p119, %p120
      %p122 = scmp.ne.s32.totalorder %s110, %s111
      %p123 = scmp.eq.s32.totalorder %s19, 1
      %p124 = por %p122, %p123
      %p126 = scmp.ne.s32.totalorder %s111, %s125
      %p127 = scmp.eq.s32.totalorder %s19, 0
      %p128 = por %p126, %p127
      %s129 = sadd.s32 %s21, %s20
      %s130 = sadd.s32 %s28, %s32
      %s131 = ssub.s32 %s129, %s130
      %p132 = scmp.eq.s32.totalorder %s131, 0
      %s134 = sadd.s32 %s133, 1
      %s135 = scalar_select %p132, %s133, %s134
      %p138 = pneg %p132
      %p139 = scmp.eq.s32.totalorder %s13, 1
      %p140 = por %p138, %p139
      %p141 = scmp.ne.s32.totalorder %s133, %s136
      %p142 = scmp.eq.s32.totalorder %s13, 0
      %p143 = por %p141, %p142
      %p144 = scmp.ne.s32.totalorder %s133, %s136
      %p145 = scmp.eq.s32.totalorder %s18, 1
      %p146 = por %p144, %p145
      %p147 = scmp.ne.s32.totalorder %s136, %s137
      %p148 = scmp.eq.s32.totalorder %s18, 0
      %p149 = por %p147, %p148
      %p150 = scmp.ne.s32.totalorder %s136, %s137
      %p151 = scmp.eq.s32.totalorder %s19, 1
      %p152 = por %p150, %p151
      %p154 = scmp.ne.s32.totalorder %s137, %s153
      %p155 = scmp.eq.s32.totalorder %s19, 0
      %p156 = por %p154, %p155
      %s157 = ssub.s32 %s20, %s32
      %p158 = scmp.eq.s32.totalorder %s157, 0
      %s160 = sadd.s32 %s159, 1
      %s161 = scalar_select %p158, %s159, %s160
      %p164 = pneg %p158
      %p165 = scmp.eq.s32.totalorder %s13, 1
      %p166 = por %p164, %p165
      %p167 = scmp.ne.s32.totalorder %s159, %s162
      %p168 = scmp.eq.s32.totalorder %s13, 0
      %p169 = por %p167, %p168
      %p170 = scmp.ne.s32.totalorder %s159, %s162
      %p171 = scmp.eq.s32.totalorder %s18, 1
      %p172 = por %p170, %p171
      %p173 = scmp.ne.s32.totalorder %s162, %s163
      %p174 = scmp.eq.s32.totalorder %s18, 0
      %p175 = por %p173, %p174
      %p176 = scmp.ne.s32.totalorder %s162, %s163
      %p177 = scmp.eq.s32.totalorder %s19, 1
      %p178 = por %p176, %p177
      %p180 = scmp.ne.s32.totalorder %s163, %s179
      %p181 = scmp.eq.s32.totalorder %s19, 0
      %p182 = por %p180, %p181
      %p183 = scmp.le.s32.totalorder 1, %s13
      %p184 = scmp.lt.s32.totalorder %s13, 3
      %p185 = pnand %p183, %p184
      %p186 = pneg %p185
      // Predicated region
      $region9: #{_shade_path.1} parent=5 // pred_check
        _
      $region10: #{_shade_path.1} parent=5 // pred_check_branch
        %188 = sbr.rel (%p185) target = $region12
      $region11: #{_shade_path.1} parent=5 // pred_region
        %s189 = ssub.s32 %s13, 1
        // Predicated region
        $region13: #{_shade_path.1} parent=11 // pred_check
          %p190 = pneg %p79
        $region14: #{_shade_path.1} parent=11 // pred_check_branch
          %192 = sbr.rel (%p190) target = $region16
        $region15: #{_shade_path.1} parent=11 // pred_region
          %s193 = smul.u32 2, %s22
          %p194 = scmp.lt.s32.totalorder %s193, 1
          %s195 = scalar_select %p194, %s193, 1
          %s196 = smul.addr %s195, 2
          %s197 = scalar_lea.vmem %s1, %s196
          %s198 = smul.u32 2, %s22
        $region16: #{_shade_path.1} parent=11 // pred_fallthru
          _
        // Predicated region
        $region17: #{_shade_path.1} parent=11 // pred_check
          %p199 = pneg %p100
        $region18: #{_shade_path.1} parent=11 // pred_check_branch
          %201 = sbr.rel (%p199) target = $region20
        $region19: #{_shade_path.1} parent=11 // pred_region
          _
        $region20: #{_shade_path.1} parent=11 // pred_fallthru
          _
        // Predicated region
        $region21: #{_shade_path.1} parent=11 // pred_check
          %p202 = pneg %p121
        $region22: #{_shade_path.1} parent=11 // pred_check_branch
          %204 = sbr.rel (%p202) target = $region24
        $region23: #{_shade_path.1} parent=11 // pred_region
          _
        $region24: #{_shade_path.1} parent=11 // pred_fallthru
          _
      $region12: #{_shade_path.1} parent=5 // pred_fallthru
        _
      %p205 = scmp.lt.s32.totalorder %s13, 2
      // Predicated region
      $region25: #{_shade_path.1} parent=5 // pred_check
        %p206 = pneg %p205
      $region26: #{_shade_path.1} parent=5 // pred_check_branch
        %208 = sbr.rel (%p206) target = $region28
      $region27: #{_shade_path.1} parent=5 // pred_region
        // Predicated region
        $region29: #{_shade_path.1} parent=27 // pred_check
          %p209 = pneg %p47
        $region30: #{_shade_path.1} parent=27 // pred_check_branch
          %211 = sbr.rel (%p209) target = $region32
        $region31: #{_shade_path.1} parent=27 // pred_region
          %s212 = sand.u32 %s37, 1
          %s213 = sand.u32 %s37, 1
          %s214 = smul.addr %s213, 32
          %s215 = scalar_lea.vmem [#allocation2], %s214
          %s216 = sadd.s32 %s21, %s20
          %s217 = smul.u32 2, %s216
          %s218 = smul.addr %s217, 8
          %s219 = scalar_lea.vmem %s0, %s218
          // Predicated region
          $region33: #{_shade_path.1} parent=31 // pred_check
            _
          $region34: #{_shade_path.1} parent=31 // pred_check_branch
            %221 = sbr.rel (0) target = $region36
          $region35: #{_shade_path.1} parent=31 // pred_region
            // Predicated region
            $region37: #{_shade_path.1} parent=35 // pred_check
              _
            $region38: #{_shade_path.1} parent=35 // pred_check_branch
              %223 = sbr.rel (0) target = $region40
            $region39: #{_shade_path.1} parent=35 // pred_region
              loop: start=0, step=1, limit=1
              $region41: #{_shade_path.1} parent=39 // loop_pre_header
                _
              $region42: #{_shade_path.1} parent=39 // loop_header
                %s225 = sphi 0, %s229
                %p226 = scmp.ge.s32.totalorder %s225, 1
                %s230 = sphi %s219, %s219
                %s231 = sphi %s215, %s215
              $region43: #{_shade_path.1} parent=39 // loop_header_branch
                %228 = sbr.rel (%p226) target = $region47
              $region44: #{_shade_path.1} parent=39 // loop_body
                %v232 = vld [vmem:[%s230] sm:$0xff]
                %233 = vst [vmem:[%s231] sm:$0xff] %v232
                %v234 = vld [vmem:[%s230 + $0x8] sm:$0xff]
                %235 = vst [vmem:[%s231 + $0x8] sm:$0xff] %v234
                %v236 = vld [vmem:[%s230 + $0x20] sm:$0xff]
                %237 = vst [vmem:[%s231 + $0x10] sm:$0xff] %v236
                %v238 = vld [vmem:[%s230 + $0x28] sm:$0xff]
                %239 = vst [vmem:[%s231 + $0x18] sm:$0xff] %v238
              $region45: #{_shade_path.1} parent=39 // loop_footer
                %s229 = sadd.s32 1, %s225
              $region46: #{_shade_path.1} parent=39 // loop_footer_branch
                %224 = sbr.rel target = $region42
              $region47: #{_shade_path.1} parent=39 // loop_exit
                _
            $region40: #{_shade_path.1} parent=35 // pred_fallthru
              _
            // Predicated region
            $region48: #{_shade_path.1} parent=35 // pred_check
              _
            $region49: #{_shade_path.1} parent=35 // pred_check_branch
              %241 = sbr.rel target = $region51
            $region50: #{_shade_path.1} parent=35 // pred_region
              _
            $region51: #{_shade_path.1} parent=35 // pred_fallthru
              _
          $region36: #{_shade_path.1} parent=31 // pred_fallthru
            _
          %242 = vnop
        $region32: #{_shade_path.1} parent=27 // pred_fallthru
          _
      $region28: #{_shade_path.1} parent=5 // pred_fallthru
        _
      %p243 = scmp.le.s32.totalorder 1, %s13
      %p244 = scmp.lt.s32.totalorder %s13, 3
      %p245 = pnand %p243, %p244
      %p246 = pneg %p245
      // Predicated region
      $region52: #{_shade_path.1} parent=5 // pred_check
        _
      $region53: #{_shade_path.1} parent=5 // pred_check_branch
        %248 = sbr.rel (%p245) target = $region55
      $region54: #{_shade_path.1} parent=5 // pred_region
        %s249 = ssub.s32 %s13, 1
        %s250 = sand.u32 %s40, 1
        %s251 = sand.u32 %s40, 1
        %s252 = smul.addr %s251, 32
        %s253 = scalar_lea.vmem [#allocation2], %s252
        // Predicated region
        $region56: #{_shade_path.1} parent=54 // pred_check
          %p254 = pneg %p53
        $region57: #{_shade_path.1} parent=54 // pred_check_branch
          %256 = sbr.rel (%p254) target = $region59
        $region58: #{_shade_path.1} parent=54 // pred_region
          _
        $region59: #{_shade_path.1} parent=54 // pred_fallthru
          _
        %s257 = sand.u32 %s40, 1
        %s258 = sand.u32 %s40, 1
        %s259 = smul.addr %s258, 32
        %s260 = scalar_lea.vmem [#allocation2], %s259
        %p261 = pneg %p53
        %p262 = pneg %p50
        %s263 = smul.u32 2, %s22
        %p264 = scmp.lt.s32.totalorder %s263, 1
        %s265 = scalar_select %p264, %s263, 1
        %s266 = smul.addr %s265, 2
        %s267 = scalar_lea.vmem %s1, %s266
        %p268 = pneg %p79
        %p269 = pneg %p76
        %p270 = pneg %p100
        %p271 = pneg %p97
        %p272 = pneg %p121
        %p273 = pneg %p118
        %p274 = pneg %p149
        %p275 = pneg %p146
        %s276 = sand.u32 %s136, 1
        %s277 = sand.u32 %s136, 1
        %s278 = smul.addr %s277, 16
        %s279 = scalar_lea.vmem [#allocation3], %s278
        %p280 = pneg %p175
        %p281 = pneg %p172
        %s282 = sadd.s32 %s23, %s22
        %s283 = smul.u32 2, %s282
        %s284 = smul.u32 2, %s22
        %p285 = scmp.lt.s32.totalorder %s284, 1
        %s286 = scalar_select %p285, %s284, 1
        %s287 = smul.addr %s286, 2
        %s288 = scalar_lea.vmem %s1, %s287
        %s289 = smul.u32 2, %s22
        %s290 = sadd.s32 %s23, %s22
        %s291 = smul.u32 2, %s290
        %s292 = smul.u32 2, %s22
        %v294 = vld [vmem:[%s253] sm:$0xff]
        %v295 = vld [vmem:[%s253 + $0x8] sm:$0xff]
        %v296 = vld [vmem:[%s253 + $0x10] sm:$0x3]
        %v297 = vld [vmem:[%s253 + $0x18] sm:$0x3]
        %v298 = vld [vmem:[%s288] sm:$0xf]
        %v299 = vunpack.c.l.bf16 %v298
        %v300 = vld [vmem:[%s2] sm:$0xf]
        %v301 = vld [vmem:[%s2 + $0x4] sm:$0xf]
        %v302 = vld [vmem:[%s2 + $0x8] sm:$0xf]
        %v303 = vld [vmem:[%s2 + $0xc] sm:$0xf]
        %v304 = vld [vmem:[%s2 + $0x10] sm:$0xf]
        %v305 = vld [vmem:[%s2 + $0x14] sm:$0xf]
        %v306 = vld [vmem:[%s2 + $0x18] sm:$0xf]
        %v307 = vld [vmem:[%s2 + $0x1c] sm:$0xf]
        %v308 = vunpack.c.l.bf16 %v300
        %v309 = vunpack.c.l.bf16 %v301
        %v310 = vunpack.c.l.bf16 %v302
        %v311 = vunpack.c.l.bf16 %v303
        %v312 = vunpack.c.l.bf16 %v304
        %v313 = vunpack.c.l.bf16 %v305
        %v314 = vunpack.c.l.bf16 %v306
        %v315 = vunpack.c.l.bf16 %v307
        %v316 = vld [vmem:[%s3] sm:$0xff]
        %v317 = vld [vmem:[%s3 + $0x8] sm:$0xff]
        %v318 = vld [vmem:[%s3 + $0x10] sm:$0xff]
        %v319 = vld [vmem:[%s3 + $0x18] sm:$0xff]
        %v320 = vld [vmem:[%s3 + $0x20] sm:$0xff]
        %v321 = vld [vmem:[%s3 + $0x28] sm:$0xff]
        %v322 = vld [vmem:[%s3 + $0x30] sm:$0xff]
        %v323 = vld [vmem:[%s3 + $0x38] sm:$0xff]
        %v324 = vld [vmem:[%s2 + $0x20] sm:$0xf]
        %v325 = vld [vmem:[%s2 + $0x24] sm:$0xf]
        %v326 = vld [vmem:[%s2 + $0x28] sm:$0xf]
        %v327 = vld [vmem:[%s2 + $0x2c] sm:$0xf]
        %v328 = vld [vmem:[%s2 + $0x30] sm:$0xf]
        %v329 = vld [vmem:[%s2 + $0x34] sm:$0xf]
        %v330 = vld [vmem:[%s2 + $0x38] sm:$0xf]
        %v331 = vld [vmem:[%s2 + $0x3c] sm:$0xf]
        %v332 = vld [vmem:[%s3 + $0x40] sm:$0xff]
        %v333 = vld [vmem:[%s3 + $0x48] sm:$0xff]
        %v334 = vld [vmem:[%s3 + $0x50] sm:$0xff]
        %v335 = vld [vmem:[%s3 + $0x58] sm:$0xff]
        %v336 = vld [vmem:[%s3 + $0x60] sm:$0xff]
        %v337 = vld [vmem:[%s3 + $0x68] sm:$0xff]
        %v338 = vld [vmem:[%s3 + $0x70] sm:$0xff]
        %v339 = vld [vmem:[%s3 + $0x78] sm:$0xff]
        %v340 = vld [vmem:[%s2 + $0x40] sm:$0xf]
        %v341 = vld [vmem:[%s3 + $0x80] sm:$0xff]
        %343 = vset.pattern.permute.xlu0 0
        %344 = vperm.xlu0 %343, %v308
        %v345 = vpop.permute.xlu0 %344
        %348 = vset.pattern.permute.xlu0 0
        %349 = vperm.xlu0 %348, %v309
        %v350 = vpop.permute.xlu0 %349
        %353 = vset.pattern.permute.xlu0 0
        %354 = vperm.xlu0 %353, %v310
        %v355 = vpop.permute.xlu0 %354
        %358 = vset.pattern.permute.xlu0 0
        %359 = vperm.xlu0 %358, %v311
        %v360 = vpop.permute.xlu0 %359
        %363 = vset.pattern.permute.xlu0 0
        %364 = vperm.xlu0 %363, %v312
        %v365 = vpop.permute.xlu0 %364
        %368 = vset.pattern.permute.xlu0 0
        %369 = vperm.xlu0 %368, %v313
        %v370 = vpop.permute.xlu0 %369
        %373 = vset.pattern.permute.xlu0 0
        %374 = vperm.xlu0 %373, %v314
        %v375 = vpop.permute.xlu0 %374
        %378 = vset.pattern.permute.xlu0 0
        %379 = vperm.xlu0 %378, %v315
        %v380 = vpop.permute.xlu0 %379
        %v382 = vlaneseq
        %v383 = vshrl.u32 %v382, 7
        %v384 = vsub.s32 0, %v383
        %v385 = vrot.slane %v294, %v384
        %v386 = vlaneseq
        %v387 = vshrl.u32 %v386, 7
        %v388 = vsub.s32 0, %v387
        %v389 = vrot.slane %v295, %v388
        %v390 = vmul.f32 %v345, %v385
        %v391 = vmul.f32 %v345, %v389
        %v392 = vmul.f32 %v350, %v385
        %v393 = vmul.f32 %v350, %v389
        %v394 = vmul.f32 %v355, %v385
        %v395 = vmul.f32 %v355, %v389
        %v396 = vmul.f32 %v360, %v385
        %v397 = vmul.f32 %v360, %v389
        %v398 = vmul.f32 %v365, %v385
        %v399 = vmul.f32 %v365, %v389
        %v400 = vmul.f32 %v370, %v385
        %v401 = vmul.f32 %v370, %v389
        %v402 = vmul.f32 %v375, %v385
        %v403 = vmul.f32 %v375, %v389
        %v404 = vmul.f32 %v380, %v385
        %v405 = vmul.f32 %v380, %v389
        %406 = vset.pattern.permute.xlu0 1
        %407 = vperm.xlu0 %406, %v308
        %v408 = vpop.permute.xlu0 %407
        %410 = vset.pattern.permute.xlu0 1
        %411 = vperm.xlu0 %410, %v309
        %v412 = vpop.permute.xlu0 %411
        %414 = vset.pattern.permute.xlu0 1
        %415 = vperm.xlu0 %414, %v310
        %v416 = vpop.permute.xlu0 %415
        %418 = vset.pattern.permute.xlu0 1
        %419 = vperm.xlu0 %418, %v311
        %v420 = vpop.permute.xlu0 %419
        %422 = vset.pattern.permute.xlu0 1
        %423 = vperm.xlu0 %422, %v312
        %v424 = vpop.permute.xlu0 %423
        %426 = vset.pattern.permute.xlu0 1
        %427 = vperm.xlu0 %426, %v313
        %v428 = vpop.permute.xlu0 %427
        %430 = vset.pattern.permute.xlu0 1
        %431 = vperm.xlu0 %430, %v314
        %v432 = vpop.permute.xlu0 %431
        %434 = vset.pattern.permute.xlu0 1
        %435 = vperm.xlu0 %434, %v315
        %v436 = vpop.permute.xlu0 %435
        %v438 = vlaneseq
        %v439 = vshrl.u32 %v438, 7
        %v440 = vsub.s32 1, %v439
        %v441 = vrot.slane %v294, %v440
        %v442 = vlaneseq
        %v443 = vshrl.u32 %v442, 7
        %v444 = vsub.s32 1, %v443
        %v445 = vrot.slane %v295, %v444
        %v446 = vmul.f32 %v408, %v441
        %v447 = vmul.f32 %v408, %v445
        %v448 = vmul.f32 %v412, %v441
        %v449 = vmul.f32 %v412, %v445
        %v450 = vmul.f32 %v416, %v441
        %v451 = vmul.f32 %v416, %v445
        %v452 = vmul.f32 %v420, %v441
        %v453 = vmul.f32 %v420, %v445
        %v454 = vmul.f32 %v424, %v441
        %v455 = vmul.f32 %v424, %v445
        %v456 = vmul.f32 %v428, %v441
        %v457 = vmul.f32 %v428, %v445
        %v458 = vmul.f32 %v432, %v441
        %v459 = vmul.f32 %v432, %v445
        %v460 = vmul.f32 %v436, %v441
        %v461 = vmul.f32 %v436, %v445
        %v462 = vadd.f32 %v390, %v446
        %v463 = vadd.f32 %v391, %v447
        %v464 = vadd.f32 %v392, %v448
        %v465 = vadd.f32 %v393, %v449
        %v466 = vadd.f32 %v394, %v450
        %v467 = vadd.f32 %v395, %v451
        %v468 = vadd.f32 %v396, %v452
        %v469 = vadd.f32 %v397, %v453
        %v470 = vadd.f32 %v398, %v454
        %v471 = vadd.f32 %v399, %v455
        %v472 = vadd.f32 %v400, %v456
        %v473 = vadd.f32 %v401, %v457
        %v474 = vadd.f32 %v402, %v458
        %v475 = vadd.f32 %v403, %v459
        %v476 = vadd.f32 %v404, %v460
        %v477 = vadd.f32 %v405, %v461
        %478 = vset.pattern.permute.xlu0 2
        %479 = vperm.xlu0 %478, %v308
        %v480 = vpop.permute.xlu0 %479
        %482 = vset.pattern.permute.xlu0 2
        %483 = vperm.xlu0 %482, %v309
        %v484 = vpop.permute.xlu0 %483
        %486 = vset.pattern.permute.xlu0 2
        %487 = vperm.xlu0 %486, %v310
        %v488 = vpop.permute.xlu0 %487
        %490 = vset.pattern.permute.xlu0 2
        %491 = vperm.xlu0 %490, %v311
        %v492 = vpop.permute.xlu0 %491
        %494 = vset.pattern.permute.xlu0 2
        %495 = vperm.xlu0 %494, %v312
        %v496 = vpop.permute.xlu0 %495
        %498 = vset.pattern.permute.xlu0 2
        %499 = vperm.xlu0 %498, %v313
        %v500 = vpop.permute.xlu0 %499
        %502 = vset.pattern.permute.xlu0 2
        %503 = vperm.xlu0 %502, %v314
        %v504 = vpop.permute.xlu0 %503
        %506 = vset.pattern.permute.xlu0 2
        %507 = vperm.xlu0 %506, %v315
        %v508 = vpop.permute.xlu0 %507
        %v510 = vlaneseq
        %v511 = vshrl.u32 %v510, 7
        %v512 = vsub.s32 2, %v511
        %v513 = vrot.slane %v294, %v512
        %v514 = vlaneseq
        %v515 = vshrl.u32 %v514, 7
        %v516 = vsub.s32 2, %v515
        %v517 = vrot.slane %v295, %v516
        %v518 = vmul.f32 %v480, %v513
        %v519 = vmul.f32 %v480, %v517
        %v520 = vmul.f32 %v484, %v513
        %v521 = vmul.f32 %v484, %v517
        %v522 = vmul.f32 %v488, %v513
        %v523 = vmul.f32 %v488, %v517
        %v524 = vmul.f32 %v492, %v513
        %v525 = vmul.f32 %v492, %v517
        %v526 = vmul.f32 %v496, %v513
        %v527 = vmul.f32 %v496, %v517
        %v528 = vmul.f32 %v500, %v513
        %v529 = vmul.f32 %v500, %v517
        %v530 = vmul.f32 %v504, %v513
        %v531 = vmul.f32 %v504, %v517
        %v532 = vmul.f32 %v508, %v513
        %v533 = vmul.f32 %v508, %v517
        %v534 = vadd.f32 %v462, %v518
        %v535 = vadd.f32 %v463, %v519
        %v536 = vadd.f32 %v464, %v520
        %v537 = vadd.f32 %v465, %v521
        %v538 = vadd.f32 %v466, %v522
        %v539 = vadd.f32 %v467, %v523
        %v540 = vadd.f32 %v468, %v524
        %v541 = vadd.f32 %v469, %v525
        %v542 = vadd.f32 %v470, %v526
        %v543 = vadd.f32 %v471, %v527
        %v544 = vadd.f32 %v472, %v528
        %v545 = vadd.f32 %v473, %v529
        %v546 = vadd.f32 %v474, %v530
        %v547 = vadd.f32 %v475, %v531
        %v548 = vadd.f32 %v476, %v532
        %v549 = vadd.f32 %v477, %v533
        %551 = vset.pattern.permute.xlu0 0
        %552 = vperm.xlu0 %551, %v316
        %v553 = vpop.permute.xlu0 %552
        %556 = vset.pattern.permute.xlu0 0
        %557 = vperm.xlu0 %556, %v317
        %v558 = vpop.permute.xlu0 %557
        %561 = vset.pattern.permute.xlu0 0
        %562 = vperm.xlu0 %561, %v318
        %v563 = vpop.permute.xlu0 %562
        %566 = vset.pattern.permute.xlu0 0
        %567 = vperm.xlu0 %566, %v319
        %v568 = vpop.permute.xlu0 %567
        %571 = vset.pattern.permute.xlu0 0
        %572 = vperm.xlu0 %571, %v320
        %v573 = vpop.permute.xlu0 %572
        %576 = vset.pattern.permute.xlu0 0
        %577 = vperm.xlu0 %576, %v321
        %v578 = vpop.permute.xlu0 %577
        %581 = vset.pattern.permute.xlu0 0
        %582 = vperm.xlu0 %581, %v322
        %v583 = vpop.permute.xlu0 %582
        %586 = vset.pattern.permute.xlu0 0
        %587 = vperm.xlu0 %586, %v323
        %v588 = vpop.permute.xlu0 %587
        %v590 = vadd.f32 %v534, %v553
        %v591 = vadd.f32 %v535, %v553
        %v592 = vadd.f32 %v536, %v558
        %v593 = vadd.f32 %v537, %v558
        %v594 = vadd.f32 %v538, %v563
        %v595 = vadd.f32 %v539, %v563
        %v596 = vadd.f32 %v540, %v568
        %v597 = vadd.f32 %v541, %v568
        %v598 = vadd.f32 %v542, %v573
        %v599 = vadd.f32 %v543, %v573
        %v600 = vadd.f32 %v544, %v578
        %v601 = vadd.f32 %v545, %v578
        %v602 = vadd.f32 %v546, %v583
        %v603 = vadd.f32 %v547, %v583
        %v604 = vadd.f32 %v548, %v588
        %v605 = vadd.f32 %v549, %v588
        %v606 = vmax.f32 %v590, 0.0
        %v607 = vmax.f32 %v591, 0.0
        %v608 = vmax.f32 %v592, 0.0
        %v609 = vmax.f32 %v593, 0.0
        %v610 = vmax.f32 %v594, 0.0
        %v611 = vmax.f32 %v595, 0.0
        %v612 = vmax.f32 %v596, 0.0
        %v613 = vmax.f32 %v597, 0.0
        %v614 = vmax.f32 %v598, 0.0
        %v615 = vmax.f32 %v599, 0.0
        %v616 = vmax.f32 %v600, 0.0
        %v617 = vmax.f32 %v601, 0.0
        %v618 = vmax.f32 %v602, 0.0
        %v619 = vmax.f32 %v603, 0.0
        %v620 = vmax.f32 %v604, 0.0
        %v621 = vmax.f32 %v605, 0.0
        %v622 = vpack.c.bf16 %v608, %v606
        %v623 = vpack.c.bf16 %v609, %v607
        %v624 = vpack.c.bf16 %v612, %v610
        %v625 = vpack.c.bf16 %v613, %v611
        %v626 = vpack.c.bf16 %v616, %v614
        %v627 = vpack.c.bf16 %v617, %v615
        %v628 = vpack.c.bf16 %v620, %v618
        %v629 = vpack.c.bf16 %v621, %v619
        %631 = vset.pattern.permute.xlu0 0
        %632 = vperm.xlu0 %631, %v332
        %v633 = vpop.permute.xlu0 %632
        %636 = vset.pattern.permute.xlu0 0
        %637 = vperm.xlu0 %636, %v333
        %v638 = vpop.permute.xlu0 %637
        %641 = vset.pattern.permute.xlu0 0
        %642 = vperm.xlu0 %641, %v334
        %v643 = vpop.permute.xlu0 %642
        %646 = vset.pattern.permute.xlu0 0
        %647 = vperm.xlu0 %646, %v335
        %v648 = vpop.permute.xlu0 %647
        %651 = vset.pattern.permute.xlu0 0
        %652 = vperm.xlu0 %651, %v336
        %v653 = vpop.permute.xlu0 %652
        %656 = vset.pattern.permute.xlu0 0
        %657 = vperm.xlu0 %656, %v337
        %v658 = vpop.permute.xlu0 %657
        %661 = vset.pattern.permute.xlu0 0
        %662 = vperm.xlu0 %661, %v338
        %v663 = vpop.permute.xlu0 %662
        %666 = vset.pattern.permute.xlu0 0
        %667 = vperm.xlu0 %666, %v339
        %v668 = vpop.permute.xlu0 %667
        %v678 = vunpack.c.l.b16 %v324
        %v679 = vunpack.c.l.b16 %v325
        %v680 = vunpack.c.l.b16 %v326
        %v681 = vunpack.c.l.b16 %v327
        %v682 = vunpack.c.l.b16 %v328
        %v683 = vunpack.c.l.b16 %v329
        %v684 = vunpack.c.l.b16 %v330
        %v685 = vunpack.c.l.b16 %v331
        %v686 = vpack.c.b16 %v679, %v678
        %v687 = vpack.c.b16 %v681, %v680
        %v688 = vpack.c.b16 %v683, %v682
        %v689 = vpack.c.b16 %v685, %v684
        %vm690 = vcmask 523264
        %v692 = vsel %vm690, %v686, 0
        %v695 = vsel %vm690, %v687, 0
        %v698 = vsel %vm690, %v688, 0
        %v701 = vsel %vm690, %v689, 0
        %703 = vmatprep.subr.bf16.mxu0 0
        %704 = vmatpush1.bf16.msra.mxu0 0
        %705 = vmatprep.subr.bf16.mxu0 0
        %706 = vmatpush1.bf16.msra.mxu0 0
        %707 = vmatprep.subr.bf16.mxu0 0
        %708 = vmatpush1.bf16.msra.mxu0 0
        %709 = vmatprep.subr.bf16.mxu0 0
        %710 = vmatpush1.bf16.msra.mxu0 0
        %711 = vmatprep.subr.bf16.mxu0 %v629
        %712 = vmatpush1.bf16.msra.mxu0 %v628
        %713 = vmatprep.subr.bf16.mxu0 %v627
        %714 = vmatpush1.bf16.msra.mxu0 %v626
        %715 = vmatprep.subr.bf16.mxu0 %v625
        %716 = vmatpush1.bf16.msra.mxu0 %v624
        %717 = vmatprep.subr.bf16.mxu0 %v623
        %718 = vmatpush1.bf16.msra.mxu0 %v622
        %719 = vmatprep.subr.bf16.mxu0 0
        %720 = vmatpush2.bf16.msra.mxu0 0
        %721 = vmatprep.subr.bf16.mxu0 0
        %722 = vmatpush2.bf16.msra.mxu0 0
        %723 = vmatprep.subr.bf16.mxu0 0
        %724 = vmatpush2.bf16.msra.mxu0 0
        %725 = vmatprep.subr.bf16.mxu0 0
        %726 = vmatpush2.bf16.msra.mxu0 0
        %727 = vmatprep.subr.bf16.mxu0 0
        %728 = vmatpush2.bf16.msra.mxu0 0
        %729 = vmatprep.subr.bf16.mxu0 0
        %730 = vmatpush2.bf16.msra.mxu0 0
        %731 = vmatprep.subr.bf16.mxu0 0
        %732 = vmatpush2.bf16.msra.mxu0 0
        %733 = vmatprep.subr.bf16.mxu0 0
        %734 = vmatpush2.bf16.msra.mxu0 0
        %735 = vmatprep.mubr.bf16.mxu0 0
        %736 = vmatmul.mubr.bf16.gmra.mxu0 %v692
        %v737 = vpop.f32.mrf.mxu0
        %v738 = vadd.f32 %v633, %v737
        %v739 = vpop.f32.mrf.mxu0
        %v740 = vadd.f32 %v633, %v739
        %v741 = vpop.f32.mrf.mxu0
        %v742 = vadd.f32 %v638, %v741
        %v743 = vpop.f32.mrf.mxu0
        %v744 = vadd.f32 %v638, %v743
        %745 = vmatprep.mubr.bf16.mxu0 0
        %746 = vmatmul.mubr.bf16.gmra.mxu0 %v695
        %v747 = vpop.f32.mrf.mxu0
        %v748 = vadd.f32 %v643, %v747
        %v749 = vpop.f32.mrf.mxu0
        %v750 = vadd.f32 %v643, %v749
        %v751 = vpop.f32.mrf.mxu0
        %v752 = vadd.f32 %v648, %v751
        %v753 = vpop.f32.mrf.mxu0
        %v754 = vadd.f32 %v648, %v753
        %755 = vmatprep.mubr.bf16.mxu0 0
        %756 = vmatmul.mubr.bf16.gmra.mxu0 %v698
        %v757 = vpop.f32.mrf.mxu0
        %v758 = vadd.f32 %v653, %v757
        %v759 = vpop.f32.mrf.mxu0
        %v760 = vadd.f32 %v653, %v759
        %v761 = vpop.f32.mrf.mxu0
        %v762 = vadd.f32 %v658, %v761
        %v763 = vpop.f32.mrf.mxu0
        %v764 = vadd.f32 %v658, %v763
        %765 = vmatprep.mubr.bf16.mxu0 0
        %766 = vmatmul.mubr.bf16.gmra.mxu0 %v701
        %v767 = vpop.f32.mrf.mxu0
        %v768 = vadd.f32 %v663, %v767
        %v769 = vpop.f32.mrf.mxu0
        %v770 = vadd.f32 %v663, %v769
        %v771 = vpop.f32.mrf.mxu0
        %v772 = vadd.f32 %v668, %v771
        %v773 = vpop.f32.mrf.mxu0
        %v774 = vadd.f32 %v668, %v773
        %775 = vdwg.mxu0
        %v776 = vmax.f32 %v738, 0.0
        %v777 = vmax.f32 %v740, 0.0
        %v778 = vmax.f32 %v742, 0.0
        %v779 = vmax.f32 %v744, 0.0
        %v780 = vmax.f32 %v748, 0.0
        %v781 = vmax.f32 %v750, 0.0
        %v782 = vmax.f32 %v752, 0.0
        %v783 = vmax.f32 %v754, 0.0
        %v784 = vmax.f32 %v758, 0.0
        %v785 = vmax.f32 %v760, 0.0
        %v786 = vmax.f32 %v762, 0.0
        %v787 = vmax.f32 %v764, 0.0
        %v788 = vmax.f32 %v768, 0.0
        %v789 = vmax.f32 %v770, 0.0
        %v790 = vmax.f32 %v772, 0.0
        %v791 = vmax.f32 %v774, 0.0
        %v792 = vpack.c.bf16 %v778, %v776
        %v793 = vpack.c.bf16 %v779, %v777
        %v794 = vpack.c.bf16 %v782, %v780
        %v795 = vpack.c.bf16 %v783, %v781
        %v796 = vpack.c.bf16 %v786, %v784
        %v797 = vpack.c.bf16 %v787, %v785
        %v798 = vpack.c.bf16 %v790, %v788
        %v799 = vpack.c.bf16 %v791, %v789
        %801 = vset.pattern.permute.xlu0 0
        %802 = vperm.xlu0 %801, %v341
        %v803 = vpop.permute.xlu0 %802
        %v806 = vsel %vm690, %v340, 0
        %808 = vmatprep.subr.bf16.mxu0 0
        %809 = vmatpush1.bf16.msra.mxu0 0
        %810 = vmatprep.subr.bf16.mxu0 0
        %811 = vmatpush1.bf16.msra.mxu0 0
        %812 = vmatprep.subr.bf16.mxu0 0
        %813 = vmatpush1.bf16.msra.mxu0 0
        %814 = vmatprep.subr.bf16.mxu0 0
        %815 = vmatpush1.bf16.msra.mxu0 0
        %816 = vmatprep.subr.bf16.mxu0 %v799
        %817 = vmatpush1.bf16.msra.mxu0 %v798
        %818 = vmatprep.subr.bf16.mxu0 %v797
        %819 = vmatpush1.bf16.msra.mxu0 %v796
        %820 = vmatprep.subr.bf16.mxu0 %v795
        %821 = vmatpush1.bf16.msra.mxu0 %v794
        %822 = vmatprep.subr.bf16.mxu0 %v793
        %823 = vmatpush1.bf16.msra.mxu0 %v792
        %824 = vmatprep.subr.bf16.mxu0 0
        %825 = vmatpush2.bf16.msra.mxu0 0
        %826 = vmatprep.subr.bf16.mxu0 0
        %827 = vmatpush2.bf16.msra.mxu0 0
        %828 = vmatprep.subr.bf16.mxu0 0
        %829 = vmatpush2.bf16.msra.mxu0 0
        %830 = vmatprep.subr.bf16.mxu0 0
        %831 = vmatpush2.bf16.msra.mxu0 0
        %832 = vmatprep.subr.bf16.mxu0 0
        %833 = vmatpush2.bf16.msra.mxu0 0
        %834 = vmatprep.subr.bf16.mxu0 0
        %835 = vmatpush2.bf16.msra.mxu0 0
        %836 = vmatprep.subr.bf16.mxu0 0
        %837 = vmatpush2.bf16.msra.mxu0 0
        %838 = vmatprep.subr.bf16.mxu0 0
        %839 = vmatpush2.bf16.msra.mxu0 0
        %840 = vmatprep.mubr.bf16.mxu0 0
        %841 = vmatmul.mubr.bf16.gmra.mxu0 %v806
        %v842 = vpop.f32.mrf.mxu0
        %v843 = vadd.f32 %v803, %v842
        %v844 = vpop.f32.mrf.mxu0
        %v845 = vadd.f32 %v803, %v844
        %v846 = vpop.f32.mrf.mxu0
        %v847 = vpop.f32.mrf.mxu0
        %848 = vdwg.mxu0
        %v849 = vtanh.pop %v843
        %v850 = vtanh.pop %v845
        %v851 = vmul.f32 %v849, 1.5707964
        %v852 = vmul.f32 %v850, 1.5707964
        %v855 = vrot.slane %v851, 5
        %v856 = vrot.slane %v852, 5
        %v859 = vadd.f32 %v294, %v855
        %v860 = vadd.f32 %v295, %v856
        %v861 = vmul.f32 %v859, %v859
        %v862 = vmul.f32 %v860, %v860
        %v865 = vrot.slane %v861, 1
        %v866 = vrot.slane %v862, 1
        %v869 = vadd.f32 %v861, %v865
        %v870 = vadd.f32 %v862, %v866
        %v871 = vrot.slane %v861, 2
        %v872 = vrot.slane %v862, 2
        %v875 = vadd.f32 %v869, %v871
        %v876 = vadd.f32 %v870, %v872
        %v877 = vadd.f32 %v875, 1e-12
        %v878 = vadd.f32 %v876, 1e-12
        %v879 = vrsqrt.pop %v877
        %v880 = vrsqrt.pop %v878
        %v881 = vmul.f32 %v859, %v879
        %v882 = vmul.f32 %v860, %v880
        %v885 = vrot.slane %v879, 7
        %v886 = vrot.slane %v880, 7
        %v889 = vmul.f32 %v859, %v885
        %v890 = vmul.f32 %v860, %v886
        %v891 = vrot.slane %v879, 6
        %v892 = vrot.slane %v880, 6
        %v895 = vmul.f32 %v859, %v891
        %v896 = vmul.f32 %v860, %v892
        %v897 = vxor.u32 %v843, 2147483648
        %v898 = vxor.u32 %v845, 2147483648
        %v899 = vmul.f32 %v897, 1.442695
        %v900 = vpow.pop %v899
        %v901 = vmul.f32 %v898, 1.442695
        %v902 = vpow.pop %v901
        %v903 = vadd.f32 %v900, 1.0
        %v904 = vadd.f32 %v902, 1.0
        %v905 = vrcp.pop %v903
        %v906 = vmul.f32 1.0, %v905
        %v907 = vrcp.pop %v904
        %v908 = vmul.f32 1.0, %v907
        %v909 = vmul.f32 %v881, 0.57735026
        %v910 = vmul.f32 %v882, 0.57735026
        %v911 = vmul.f32 %v889, 0.57735026
        %v912 = vmul.f32 %v890, 0.57735026
        %v915 = vrot.slane %v911, 1
        %v916 = vrot.slane %v912, 1
        %v919 = vadd.f32 %v909, %v915
        %v920 = vadd.f32 %v910, %v916
        %v921 = vmul.f32 %v895, 0.57735026
        %v922 = vmul.f32 %v896, 0.57735026
        %v925 = vrot.slane %v921, 2
        %v926 = vrot.slane %v922, 2
        %v929 = vadd.f32 %v919, %v925
        %v930 = vadd.f32 %v920, %v926
        %v931 = vmax.f32 %v929, 0.0
        %v932 = vmax.f32 %v930, 0.0
        %v933 = vadd.f32 %v294, 0.57735026
        %v934 = vadd.f32 %v295, 0.57735026
        %v935 = vadd.f32 %v296, 0.57735026
        %v936 = vadd.f32 %v297, 0.57735026
        %v937 = vmul.f32 %v933, %v933
        %v938 = vmul.f32 %v934, %v934
        %v941 = vrot.slane %v937, 1
        %v942 = vrot.slane %v938, 1
        %v945 = vadd.f32 %v937, %v941
        %v946 = vadd.f32 %v938, %v942
        %v947 = vmul.f32 %v935, %v935
        %v948 = vmul.f32 %v936, %v936
        %v951 = vrot.slane %v947, 2
        %v952 = vrot.slane %v948, 2
        %v955 = vadd.f32 %v945, %v951
        %v956 = vadd.f32 %v946, %v952
        %v957 = vadd.f32 %v955, 1e-12
        %v958 = vadd.f32 %v956, 1e-12
        %v959 = vrsqrt.pop %v957
        %v960 = vrsqrt.pop %v958
        %v963 = vrot.slane %v933, 3
        %v964 = vrot.slane %v934, 3
        %v967 = vmul.f32 %v881, %v963
        %v968 = vmul.f32 %v882, %v964
        %v969 = vmul.f32 %v889, %v963
        %v970 = vmul.f32 %v890, %v964
        %v973 = vrot.slane %v969, 1
        %v974 = vrot.slane %v970, 1
        %v977 = vadd.f32 %v967, %v973
        %v978 = vadd.f32 %v968, %v974
        %v981 = vrot.slane %v935, 3
        %v982 = vrot.slane %v936, 3
        %v985 = vmul.f32 %v895, %v981
        %v986 = vmul.f32 %v896, %v982
        %v989 = vrot.slane %v985, 2
        %v990 = vrot.slane %v986, 2
        %v993 = vadd.f32 %v977, %v989
        %v994 = vadd.f32 %v978, %v990
        %v997 = vrot.slane %v959, 3
        %v998 = vrot.slane %v960, 3
        %v1001 = vmul.f32 %v993, %v997
        %v1002 = vmul.f32 %v994, %v998
        %v1003 = vmax.f32 %v1001, 0.0
        %v1004 = vmax.f32 %v1002, 0.0
        %v1005 = vmul.f32 %v906, %v906
        %v1006 = vmul.f32 %v908, %v908
        %v1007 = vadd.f32 %v1005, 0.001
        %v1008 = vadd.f32 %v1006, 0.001
        %v1009 = vrcp.pop %v1007
        %v1010 = vrcp.pop %v1008
        %v1011 = vmul.f32 %v1009, 2.0
        %v1012 = vmul.f32 %v1010, 2.0
        %v1013 = vadd.f32 %v1003, 1e-06
        %v1014 = vadd.f32 %v1004, 1e-06
        %v1015 = vlog2.pop %v1013
        %v1016 = vmul.f32 %v1015, 0.6931472
        %v1017 = vlog2.pop %v1014
        %v1018 = vmul.f32 %v1017, 0.6931472
        %v1021 = vrot.slane %v1016, 4
        %v1022 = vrot.slane %v1018, 4
        %v1025 = vmul.f32 %v1011, %v1021
        %v1026 = vmul.f32 %v1012, %v1022
        %v1027 = vmul.f32 %v1025, 1.442695
        %v1028 = vpow.pop %v1027
        %v1029 = vmul.f32 %v1026, 1.442695
        %v1030 = vpow.pop %v1029
        %v1031 = vlaneseq
        %v1032 = vshrl.u32 %v1031, 7
        %v1033 = vsub.s32 3, %v1032
        %v1034 = vrot.slane %v931, %v1033
        %v1035 = vlaneseq
        %v1036 = vshrl.u32 %v1035, 7
        %v1037 = vsub.s32 3, %v1036
        %v1038 = vrot.slane %v932, %v1037
        %v1039 = vmul.f32 %v906, %v1034
        %v1040 = vmul.f32 %v908, %v1038
        %v1043 = vrot.slane %v1028, 1
        %v1044 = vrot.slane %v1030, 1
        %v1047 = vmul.f32 %v906, %v1043
        %v1048 = vmul.f32 %v908, %v1044
        %v1051 = vrot.slane %v931, 5
        %v1052 = vrot.slane %v932, 5
        %v1055 = vmul.f32 %v1047, %v1051
        %v1056 = vmul.f32 %v1048, %v1052
        %v1057 = vlaneseq
        %v1058 = vshrl.u32 %v1057, 7
        %v1059 = vsub.s32 6, %v1058
        %v1060 = vrot.slane %v1055, %v1059
        %v1061 = vlaneseq
        %v1062 = vshrl.u32 %v1061, 7
        %v1063 = vsub.s32 6, %v1062
        %v1064 = vrot.slane %v1056, %v1063
        %v1065 = vadd.f32 %v1039, %v1060
        %v1066 = vadd.f32 %v1040, %v1064
        %v1067 = vsub.f32 1.0, %v296
        %v1068 = vsub.f32 1.0, %v297
        %v1069 = vlaneseq
        %v1070 = vshrl.u32 %v1069, 7
        %v1071 = vsub.s32 1, %v1070
        %v1072 = vrot.slane %v1067, %v1071
        %v1073 = vlaneseq
        %v1074 = vshrl.u32 %v1073, 7
        %v1075 = vsub.s32 1, %v1074
        %v1076 = vrot.slane %v1068, %v1075
        %v1078 = vcombine.high %v299, %v299
        %v1080 = vmul.f32 %v1072, %v299
        %v1081 = vmul.f32 %v1076, %v1078
        %v1082 = vlaneseq
        %v1083 = vshrl.u32 %v1082, 7
        %v1084 = vsub.s32 1, %v1083
        %v1085 = vrot.slane %v296, %v1084
        %v1086 = vlaneseq
        %v1087 = vshrl.u32 %v1086, 7
        %v1088 = vsub.s32 1, %v1087
        %v1089 = vrot.slane %v297, %v1088
        %v1090 = vmul.f32 %v1085, %v1065
        %v1091 = vmul.f32 %v1089, %v1066
        %v1094 = vrot.slane %v1080, 5
        %v1095 = vrot.slane %v1081, 5
        %v1098 = vadd.f32 %v1090, %v1094
        %v1099 = vadd.f32 %v1091, %v1095
        %v1100 = vmax.f32 %v1098, 0.0
        %v1101 = vmax.f32 %v1099, 0.0
        %v1102 = vmin.f32 %v1100, 1.0
        %v1103 = vmin.f32 %v1101, 1.0
        %v1104 = vmul.f32 %v1085, %v906
        %v1105 = vmul.f32 %v1089, %v908
        %v1106 = vadd.f32 %v1104, %v1094
        %v1107 = vadd.f32 %v1105, %v1095
        %v1108 = vmax.f32 %v1106, 0.0
        %v1109 = vmax.f32 %v1107, 0.0
        %v1110 = vmin.f32 %v1108, 1.0
        %v1111 = vmin.f32 %v1109, 1.0
        %v1112 = vmul.f32 %v1085, %v1039
        %v1113 = vmul.f32 %v1089, %v1040
        %v1114 = vadd.f32 %v1112, %v1094
        %v1115 = vadd.f32 %v1113, %v1095
        %v1116 = vmax.f32 %v1114, 0.0
        %v1117 = vmax.f32 %v1115, 0.0
        %v1118 = vmin.f32 %v1116, 1.0
        %v1119 = vmin.f32 %v1117, 1.0
        %v1122 = vrot.slane %v1055, 5
        %v1123 = vrot.slane %v1056, 5
        %v1126 = vmul.f32 %v296, %v1122
        %v1127 = vmul.f32 %v297, %v1123
        %v1128 = vlaneseq
        %v1129 = vshrl.u32 %v1128, 7
        %v1130 = vsub.s32 1, %v1129
        %v1131 = vrot.slane %v1126, %v1130
        %v1132 = vlaneseq
        %v1133 = vshrl.u32 %v1132, 7
        %v1134 = vsub.s32 1, %v1133
        %v1135 = vrot.slane %v1127, %v1134
        %v1136 = vadd.f32 %v1131, %v1080
        %v1137 = vadd.f32 %v1135, %v1081
        %v1138 = vmax.f32 %v1136, 0.0
        %v1139 = vmax.f32 %v1137, 0.0
        %v1140 = vmin.f32 %v1138, 1.0
        %v1141 = vmin.f32 %v1139, 1.0
        %v1144 = vrot.slane %v1102, 3
        %v1145 = vrot.slane %v1103, 3
        %v1150 = vrot.slane %v296, 6
        %v1151 = vrot.slane %v297, 6
        %v1156 = vrot.slane %v1110, 7
        %v1157 = vrot.slane %v1111, 7
        %v1160 = vrot.slane %v296, 2
        %v1161 = vrot.slane %v297, 2
        %v1166 = vrot.slane %v1118, 3
        %v1167 = vrot.slane %v1119, 3
        %v1172 = vrot.slane %v1140, 4
        %v1173 = vrot.slane %v1141, 4
        %vm1176 = vcmask 1042432
        %v1177 = vsel %vm1176, %v1144, %v1150
        %v1178 = vsel %vm1176, %v1145, %v1151
        %vm1179 = vcmask 1043456
        %v1180 = vsel %vm1179, %v1177, %v1156
        %v1181 = vsel %vm1179, %v1178, %v1157
        %vm1182 = vcmask 1046528
        %v1183 = vsel %vm1182, %v1180, %v1160
        %v1184 = vsel %vm1182, %v1181, %v1161
        %v1185 = vsel %vm1176, %v1166, %v1150
        %v1186 = vsel %vm1176, %v1167, %v1151
        %v1187 = vsel %vm1179, %v1185, %v1172
        %v1188 = vsel %vm1179, %v1186, %v1173
        %v1189 = vsel %vm1182, %v1187, %v1160
        %v1190 = vsel %vm1182, %v1188, %v1161
        %v1191 = vpack.c.bf16 %v1189, %v1183
        %v1192 = vpack.c.bf16 %v1190, %v1184
        %v1195 = vunpack.c.l.b16 %v1191
        %v1196 = vunpack.c.l.b16 %v1192
        %v1197 = vunpack.c.h.b16 %v1191
        %v1198 = vunpack.c.h.b16 %v1192
        %v1199 = vpack.c.b16 %v1196, %v1195
        %v1200 = vpack.c.b16 %v1198, %v1197
        %1203 = vst [vmem:[%s279] sm:$0xff] %v1199
        %1204 = vst [vmem:[%s279 + $0x8] sm:$0xff] %v1200
        %v1207 = vrot.slane %v1065, 3
        %v1208 = vrot.slane %v1066, 3
        %v1211 = vsel %vm1176, %v1207, %v906
        %v1212 = vsel %vm1176, %v1208, %v908
        %vm1213 = vcmask 1045504
        %v1214 = vsel %vm1213, %v1211, %v906
        %v1215 = vsel %vm1213, %v1212, %v908
        %v1216 = vsel %vm1182, %v1214, %v906
        %v1217 = vsel %vm1182, %v1215, %v908
        %1218 = vst [vmem:[#allocation4] sm:$0xff] %v1216
        %1219 = vst [vmem:[#allocation4 + $0x8] sm:$0xff] %v1217
        %s1220 = sand.u32 %s136, 1
        %s1221 = sand.u32 %s136, 1
        %s1222 = smul.addr %s1221, 16
        %s1223 = scalar_lea.vmem [#allocation3], %s1222
        // Predicated region
        $region60: #{_shade_path.1} parent=54 // pred_check
          %p1224 = pneg %p146
        $region61: #{_shade_path.1} parent=54 // pred_check_branch
          %1226 = sbr.rel (%p1224) target = $region63
        $region62: #{_shade_path.1} parent=54 // pred_region
          %s1227 = sadd.s32 %s23, %s22
          %s1228 = smul.u32 2, %s1227
          %s1229 = smul.addr %s1228, 4
          %s1230 = scalar_lea.vmem %s4, %s1229
          // Predicated region
          $region64: #{_shade_path.1} parent=62 // pred_check
            _
          $region65: #{_shade_path.1} parent=62 // pred_check_branch
            %1232 = sbr.rel (0) target = $region67
          $region66: #{_shade_path.1} parent=62 // pred_region
            // Predicated region
            $region68: #{_shade_path.1} parent=66 // pred_check
              _
            $region69: #{_shade_path.1} parent=66 // pred_check_branch
              %1234 = sbr.rel (0) target = $region71
            $region70: #{_shade_path.1} parent=66 // pred_region
              // Predicated region
              $region83: #{_shade_path.1} parent=70 // pred_check
                _
              $region84: #{_shade_path.1} parent=70 // pred_check_branch
                %1252 = sbr.rel (0) target = $region86
              $region85: #{_shade_path.1} parent=70 // pred_region
                loop: start=0, step=1, limit=1
                $region87: #{_shade_path.1} parent=85 // loop_pre_header
                  _
                $region88: #{_shade_path.1} parent=85 // loop_header
                  %s1254 = sphi 0, %s1258
                  %p1255 = scmp.ge.s32.totalorder %s1254, 1
                  %s1259 = sphi %s1223, %s1223
                  %s1260 = sphi %s1230, %s1230
                $region89: #{_shade_path.1} parent=85 // loop_header_branch
                  %1257 = sbr.rel (%p1255) target = $region93
                $region90: #{_shade_path.1} parent=85 // loop_body
                  %v1261 = vld [vmem:[%s1259] sm:$0xff]
                  %1262 = vst [vmem:[%s1260] sm:$0xff] %v1261
                  %v1263 = vld [vmem:[%s1259 + $0x8] sm:$0xff]
                  %1264 = vst [vmem:[%s1260 + $0x10] sm:$0xff] %v1263
                $region91: #{_shade_path.1} parent=85 // loop_footer
                  %s1258 = sadd.s32 1, %s1254
                $region92: #{_shade_path.1} parent=85 // loop_footer_branch
                  %1253 = sbr.rel target = $region88
                $region93: #{_shade_path.1} parent=85 // loop_exit
                  _
              $region86: #{_shade_path.1} parent=70 // pred_fallthru
                _
              // Predicated region
              $region94: #{_shade_path.1} parent=70 // pred_check
                _
              $region95: #{_shade_path.1} parent=70 // pred_check_branch
                %1266 = sbr.rel target = $region97
              $region96: #{_shade_path.1} parent=70 // pred_region
                _
              $region97: #{_shade_path.1} parent=70 // pred_fallthru
                _
            $region71: #{_shade_path.1} parent=66 // pred_fallthru
              _
            // Predicated region
            $region72: #{_shade_path.1} parent=66 // pred_check
              _
            $region73: #{_shade_path.1} parent=66 // pred_check_branch
              %1236 = sbr.rel target = $region75
            $region74: #{_shade_path.1} parent=66 // pred_region
              %s1238 = ssub.s32 256, 1
              loop: start=0, step=1, limit=1
              $region76: #{_shade_path.1} parent=74 // loop_pre_header
                _
              $region77: #{_shade_path.1} parent=74 // loop_header
                %s1240 = sphi 0, %s1244
                %p1241 = scmp.ge.s32.totalorder %s1240, 1
                %s1245 = sphi %s1223, %s1223
                %s1246 = sphi %s1230, %s1230
              $region78: #{_shade_path.1} parent=74 // loop_header_branch
                %1243 = sbr.rel (%p1241) target = $region82
              $region79: #{_shade_path.1} parent=74 // loop_body
                %v1247 = vld [vmem:[%s1245] sm:%s1238]
                %1248 = vst [vmem:[%s1246] sm:%s1238] %v1247
                %v1249 = vld [vmem:[%s1245 + $0x8] sm:%s1238]
                %1250 = vst [vmem:[%s1246 + $0x10] sm:%s1238] %v1249
              $region80: #{_shade_path.1} parent=74 // loop_footer
                %s1244 = sadd.s32 1, %s1240
              $region81: #{_shade_path.1} parent=74 // loop_footer_branch
                %1239 = sbr.rel target = $region77
              $region82: #{_shade_path.1} parent=74 // loop_exit
                _
            $region75: #{_shade_path.1} parent=66 // pred_fallthru
              _
          $region67: #{_shade_path.1} parent=62 // pred_fallthru
            _
          %1267 = vnop
        $region63: #{_shade_path.1} parent=54 // pred_fallthru
          _
        // Predicated region
        $region98: #{_shade_path.1} parent=54 // pred_check
          %p1268 = pneg %p172
        $region99: #{_shade_path.1} parent=54 // pred_check_branch
          %1270 = sbr.rel (%p1268) target = $region101
        $region100: #{_shade_path.1} parent=54 // pred_region
          %s1271 = smul.u32 2, %s22
          %s1273 = ssub.s32 256, 256
          %1274 = vsyncadd [#allocation5], %s1273
          %s1275 = smul.addr %s1271, 128
          %s1276 = scalar_lea.hbm %s5, %s1275
          %s1278 = sshll.u32 [#allocation4], 4
          %s1279 = int_to_ptr.vmem [resolvable:$true] %s1278
          %1281 = dma.vmem_to_hbm [thread:$0]  %s1279, 256, %s1276, [#allocation5]
        $region101: #{_shade_path.1} parent=54 // pred_fallthru
          _
        // Predicated region
        $region102: #{_shade_path.1} parent=54 // pred_check
          %p1282 = pneg %p172
        $region103: #{_shade_path.1} parent=54 // pred_check_branch
          %1284 = sbr.rel (%p1282) target = $region105
        $region104: #{_shade_path.1} parent=54 // pred_region
          %1285 = dma.done [#allocation5], 256
        $region105: #{_shade_path.1} parent=54 // pred_fallthru
          _
      $region55: #{_shade_path.1} parent=5 // pred_fallthru
        _
      %p1286 = scmp.le.s32.totalorder 2, %s13
      // Predicated region
      $region106: #{_shade_path.1} parent=5 // pred_check
        %p1287 = pneg %p1286
      $region107: #{_shade_path.1} parent=5 // pred_check_branch
        %1289 = sbr.rel (%p1287) target = $region109
      $region108: #{_shade_path.1} parent=5 // pred_region
        %s1290 = ssub.s32 %s13, 2
        // Predicated region
        $region110: #{_shade_path.1} parent=108 // pred_check
          %p1291 = pneg %p152
        $region111: #{_shade_path.1} parent=108 // pred_check_branch
          %1293 = sbr.rel (%p1291) target = $region113
        $region112: #{_shade_path.1} parent=108 // pred_region
          %s1294 = sand.u32 %s137, 1
          %s1295 = sand.u32 %s137, 1
          %s1296 = smul.addr %s1295, 16
          %s1297 = scalar_lea.vmem [#allocation3], %s1296
        $region113: #{_shade_path.1} parent=108 // pred_fallthru
          _
      $region109: #{_shade_path.1} parent=5 // pred_fallthru
        _
    $region6: #{_shade_path.1} parent=1 // loop_footer
      %s17 = sadd.s32 1, %s13
    $region7: #{_shade_path.1} parent=1 // loop_footer_branch
      %12 = sbr.rel target = $region3
    $region8: #{_shade_path.1} parent=1 // loop_exit
      _
    %1298 = vsyncpa [#allocation5], 1
    %s1299 = scalar_lea.sflag [#allocation5], 1
    %1300 = vsyncpa %s1299, 1

</llo_original>
